<compile_context>
chip_gen: v7x
topology: tpu7x:2x2x1
jax: 0.10.0
libtpu: 0.0.40
codegen_flags: <defaults>
</compile_context>

<pallas_src>
import functools
import math

import jax
import jax.numpy as jnp
from jax.experimental import pallas as pl
from jax.experimental.pallas import tpu as pltpu

LEAKY_SLOPE = 0.1
BN_EPS = 1e-5


def _round_up(x, m):
    return (x + m - 1) // m * m


# ----------------------------------------------------------------------------
# Implicit-GEMM conv kernel with fused per-channel bias (+ LeakyReLU) epilogue
# ----------------------------------------------------------------------------
def _conv_kernel(x_ref, w_ref, b_ref, o_ref, acc_ref, *, kw, wo, cin, stride,
                 leaky):
    di = pl.program_id(2)                      # kernel-row tap (reduction axis)

    @pl.when(di == 0)
    def _init():
        acc_ref[...] = jnp.zeros_like(acc_ref)

    # x_ref block: (1, 1, Wp//stride, stride*Cin)   bf16 padded input row
    # w_ref block: (1, kw, Cin, Cout)               bf16 (BN scale pre-folded)
    for dj in range(kw):                       # column taps, unrolled (static)
        q, r = dj // stride, dj % stride
        a = x_ref[0, 0, pl.ds(q, wo), pl.ds(r * cin, cin)]          # (Wo, Cin)
        acc_ref[...] += jnp.dot(a, w_ref[0, dj],
                                preferred_element_type=jnp.float32)

    @pl.when(di == pl.num_programs(2) - 1)
    def _finalize():
        y = acc_ref[...] + b_ref[...]          # f32 epilogue on the accumulator
        if leaky:
            y = jnp.maximum(y, LEAKY_SLOPE * y)
        o_ref[...] = y.astype(o_ref.dtype)[None, None]


def conv2d_fused_nhwc(x, w_bf16, bias, *, stride, padding, leaky):
    """x:(N,H,W,Cin) -> (N,Ho,Wo,Cout) f32.  w_bf16:(kh,kw,Cin,Cout) bf16,
    bias:(Cout,) f32 added on the f32 accumulator in the epilogue."""
    N, H, W, Cin = x.shape
    kh, kw, wc, Cout = w_bf16.shape
    assert wc == Cin and kh == kw
    s, p = stride, padding
    Hp = H + 2 * p
    Ho = (Hp - kh) // s + 1
    Wo = (W + 2 * p - kw) // s + 1
    # Padded width so every tap fits and the stride phases fold into channels.
    q_max = (kw - 1) // s
    Wp = s * max(Wo + q_max, -(-(W + 2 * p) // s))

    x_p = jnp.pad(x.astype(jnp.bfloat16),
                  ((0, 0), (p, p), (p, Wp - W - p), (0, 0)))
    x_r = x_p.reshape(N, Hp, Wp // s, s * Cin)       # stride phases -> channels
    bias2 = bias.reshape(1, Cout).astype(jnp.float32)

    vmem_need = (2 * (Wp * Cin * 2 + kw * Cin * Cout * 2 + Wo * Cout * 4)
                 + Wo * Cout * 4 + Cout * 4)
    vmem_limit = int(min(64 * 2**20, max(32 * 2**20, 4 * vmem_need)))

    flops = 2 * N * Ho * Wo * kh * kw * Cin * Cout
    bytes_accessed = (N * Ho * kh * Wp * Cin * 2
                      + N * Ho * kh * kw * Cin * Cout * 2
                      + N * Ho * Wo * Cout * 4)

    kernel = functools.partial(_conv_kernel, kw=kw, wo=Wo, cin=Cin, stride=s,
                               leaky=leaky)
    return pl.pallas_call(
        kernel,
        out_shape=jax.ShapeDtypeStruct((N, Ho, Wo, Cout), jnp.float32),
        grid_spec=pltpu.PrefetchScalarGridSpec(
            num_scalar_prefetch=0,
            grid=(N, Ho, kh),                        # reduction axis last
            in_specs=[
                pl.BlockSpec((1, 1, Wp // s, s * Cin),
                             lambda n, oh, di: (n, oh * s + di, 0, 0)),
                pl.BlockSpec((1, kw, Cin, Cout),
                             lambda n, oh, di: (di, 0, 0, 0)),
                pl.BlockSpec((1, Cout), lambda n, oh, di: (0, 0)),
            ],
            out_specs=pl.BlockSpec((1, 1, Wo, Cout),
                                   lambda n, oh, di: (n, oh, 0, 0)),
            scratch_shapes=[pltpu.VMEM((Wo, Cout), jnp.float32)],
        ),
        compiler_params=pltpu.CompilerParams(
            dimension_semantics=("parallel", "parallel", "arbitrary"),
            vmem_limit_bytes=vmem_limit),
        cost_estimate=pl.CostEstimate(flops=flops, transcendentals=0,
                                      bytes_accessed=bytes_accessed),
    )(x_r, w_bf16.astype(jnp.bfloat16), bias2)


# ----------------------------------------------------------------------------
# Fused per-channel affine + LeakyReLU (training-mode BN epilogue)
# ----------------------------------------------------------------------------
def _affine_leaky_kernel(y_ref, s_ref, b_ref, o_ref):
    y = y_ref[...] * s_ref[...] + b_ref[...]
    o_ref[...] = jnp.maximum(y, LEAKY_SLOPE * y)


def affine_leaky_nhwc(y, scale, bias):
    N, H, W, C = y.shape
    M = N * H * W
    TM = min(512, _round_up(M, 8))
    Mp = _round_up(M, TM)
    y2 = y.reshape(M, C).astype(jnp.float32)
    if Mp != M:
        y2 = jnp.pad(y2, ((0, Mp - M), (0, 0)))
    out = pl.pallas_call(
        _affine_leaky_kernel,
        out_shape=jax.ShapeDtypeStruct((Mp, C), jnp.float32),
        grid_spec=pltpu.PrefetchScalarGridSpec(
            num_scalar_prefetch=0,
            grid=(Mp // TM,),
            in_specs=[pl.BlockSpec((TM, C), lambda i: (i, 0)),
                      pl.BlockSpec((1, C), lambda i: (0, 0)),
                      pl.BlockSpec((1, C), lambda i: (0, 0))],
            out_specs=pl.BlockSpec((TM, C), lambda i: (i, 0)),
        ),
        compiler_params=pltpu.CompilerParams(
            dimension_semantics=("parallel",)),
    )(y2, scale.reshape(1, C).astype(jnp.float32),
      bias.reshape(1, C).astype(jnp.float32))
    if Mp != M:
        out = out[:M]
    return out.reshape(N, H, W, C)


# ----------------------------------------------------------------------------
# BasicConv: parameters + forward
# ----------------------------------------------------------------------------
def make_basic_conv(key, in_channels, out_channels, kernel_size, stride,
                    padding):
    k = kernel_size
    kw_, kg_, kb_, km_, kv_ = jax.random.split(key, 5)
    fan_in = k * k * in_channels
    w = jax.random.normal(kw_, (k, k, in_channels, out_channels),
                          jnp.float32) / math.sqrt(fan_in)
    # BN parameters (fresh torch module: gamma=1, beta=0, mean=0, var=1; use
    # non-trivial synthetic values so the folded paths are truly exercised).
    gamma = 1.0 + 0.1 * jax.random.normal(kg_, (out_channels,), jnp.float32)
    beta = 0.1 * jax.random.normal(kb_, (out_channels,), jnp.float32)
    running_mean = 0.1 * jax.random.normal(km_, (out_channels,), jnp.float32)
    running_var = 1.0 + 0.2 * jax.random.uniform(kv_, (out_channels,),
                                                 jnp.float32)
    # One-time weight prep (no per-call pads / folds).
    eval_scale = gamma * jax.lax.rsqrt(running_var + BN_EPS)
    return dict(w_bf16=w.astype(jnp.bfloat16),
                w_eval_bf16=(w * eval_scale).astype(jnp.bfloat16),
                eval_bias=beta - running_mean * eval_scale,
                gamma=gamma, beta=beta,
                zero_bias=jnp.zeros((out_channels,), jnp.float32),
                stride=stride, padding=padding)


def basic_conv_nhwc(prm, x, *, training=True):
    if training:
        # Raw conv -> batch statistics -> fused affine + LeakyReLU kernel.
        y = conv2d_fused_nhwc(x, prm["w_bf16"], prm["zero_bias"],
                              stride=prm["stride"], padding=prm["padding"],
                              leaky=False)
        mean = jnp.mean(y, axis=(0, 1, 2))
        var = jnp.var(y, axis=(0, 1, 2))          # biased var, as BN forward
        scale = prm["gamma"] * jax.lax.rsqrt(var + BN_EPS)
        bias = prm["beta"] - mean * scale
        # TODO(synk): running-stat momentum updates (a training side effect,
        # not part of the forward output) are not computed.
        return affine_leaky_nhwc(y, scale, bias)
    # Eval mode: BN folded into weights/bias, LeakyReLU fused in the epilogue.
    return conv2d_fused_nhwc(x, prm["w_eval_bf16"], prm["eval_bias"],
                             stride=prm["stride"], padding=prm["padding"],
                             leaky=True)


def basic_conv(prm, x_nchw, *, training=True):
    """PyTorch-interface BasicConv: NCHW in, NCHW out."""
    x = jnp.transpose(x_nchw, (0, 2, 3, 1)).astype(jnp.float32)
    y = basic_conv_nhwc(prm, x, training=training)
    return jnp.transpose(y, (0, 3, 1, 2))


def sequential_nchw(layers, x_nchw, *, training=True):
    """Chain of BasicConv blocks; NCHW<->NHWC transposed once at the ends."""
    x = jnp.transpose(x_nchw, (0, 2, 3, 1)).astype(jnp.float32)
    for prm in layers:
        x = basic_conv_nhwc(prm, x, training=training)
    return jnp.transpose(x, (0, 3, 1, 2))


# ----------------------------------------------------------------------------
# Pure-XLA reference (matching bf16 operand quantization) for validation
# ----------------------------------------------------------------------------
def _reference_nhwc(prm, x, *, training=True):
    w = prm["w_bf16"] if training else prm["w_eval_bf16"]
    y = jax.lax.conv_general_dilated(
        x.astype(jnp.bfloat16), w,
        window_strides=(prm["stride"], prm["stride"]),
        padding=[(prm["padding"], prm["padding"])] * 2,
        dimension_numbers=("NHWC", "HWIO", "NHWC"),
        preferred_element_type=jnp.float32)
    if training:
        mean = jnp.mean(y, axis=(0, 1, 2))
        var = jnp.var(y, axis=(0, 1, 2))
        scale = prm["gamma"] * jax.lax.rsqrt(var + BN_EPS)
        y = y * scale + (prm["beta"] - mean * scale)
    else:
        y = y + prm["eval_bias"]
    return jnp.maximum(y, LEAKY_SLOPE * y)


def reference_sequential_nchw(layers, x_nchw, *, training=True):
    x = jnp.transpose(x_nchw, (0, 2, 3, 1)).astype(jnp.float32)
    for prm in layers:
        x = _reference_nhwc(prm, x, training=training)
    return jnp.transpose(x, (0, 3, 1, 2))


if __name__ == "__main__":
    root = jax.random.PRNGKey(0)
    kx, k1, k2, k3 = jax.random.split(root, 4)

    # Small example (NCHW, like torch): batch=2, 4 channels, 16x16 spatial.
    x = jax.random.normal(kx, (2, 4, 16, 16), jnp.float32)

    layers = [
        make_basic_conv(k1, 4, 32, 3, 1, 1),    # 3x3 / stride 1 / pad 1
        make_basic_conv(k2, 32, 64, 3, 2, 1),   # 3x3 / stride 2 / pad 1
        make_basic_conv(k3, 64, 64, 1, 1, 0),   # 1x1 / stride 1 / pad 0
    ]

    run_train = jax.jit(functools.partial(sequential_nchw, layers,
                                          training=True))
    run_eval = jax.jit(functools.partial(sequential_nchw, layers,
                                         training=False))

    out_train = jax.block_until_ready(run_train(x))
    out_eval = jax.block_until_ready(run_eval(x))

    assert out_train.shape == (2, 64, 8, 8), out_train.shape
    assert out_eval.shape == (2, 64, 8, 8), out_eval.shape
    assert bool(jnp.all(jnp.isfinite(out_train)))
    assert bool(jnp.all(jnp.isfinite(out_eval)))

    ref_train = reference_sequential_nchw(layers, x, training=True)
    ref_eval = reference_sequential_nchw(layers, x, training=False)
    assert bool(jnp.allclose(out_train, ref_train, atol=2e-2, rtol=2e-2)), \
        float(jnp.max(jnp.abs(out_train - ref_train)))
    assert bool(jnp.allclose(out_eval, ref_eval, atol=2e-2, rtol=2e-2)), \
        float(jnp.max(jnp.abs(out_eval - ref_eval)))

    print("KERNEL_OK")
</pallas_src>

<mosaic_0001>
module attributes {stable_mosaic.version = 11 : i64} {
  func.func @_conv_kernel(%arg0: i32, %arg1: i32, %arg2: i32, %arg3: memref<1x1x18x4xbf16, #tpu.memory_space<vmem>>, %arg4: memref<1x3x4x32xbf16, #tpu.memory_space<vmem>>, %arg5: memref<1x32xf32, #tpu.memory_space<vmem>>, %arg6: memref<1x1x16x32xf32, #tpu.memory_space<vmem>>, %arg7: memref<16x32xf32, #tpu.memory_space<vmem>>) attributes {dimension_semantics = [#tpu.dimension_semantics<parallel>, #tpu.dimension_semantics<parallel>, #tpu.dimension_semantics<arbitrary>], iteration_bounds = array<i64: 2, 16, 3>, scalar_prefetch = 0 : i64, scratch_operands = 1 : i64, tpu.core_type = #tpu.core_type<tc>, window_params = [{transform_indices = @transform_0, window_bounds = array<i64: 1, 1, 18, 4>}, {transform_indices = @transform_1, window_bounds = array<i64: 1, 3, 4, 32>}, {pipeline_mode = #tpu.pipeline_mode<synchronous>, transform_indices = @transform_2, window_bounds = array<i64: 1, 32>}, {transform_indices = @transform_3, window_bounds = array<i64: 1, 1, 16, 32>}]} {
    %c0_i32 = arith.constant 0 : i32
    %0 = arith.cmpi eq, %arg2, %c0_i32 : i32
    %1 = arith.extui %0 : i1 to i32
    %c0_i32_0 = arith.constant 0 : i32
    %2 = arith.cmpi ne, %1, %c0_i32_0 : i32
    scf.if %2 {
      %cst_37 = arith.constant 0.000000e+00 : f32
      %30 = vector.broadcast %cst_37 : f32 to vector<16x32xf32>
      %c0_38 = arith.constant 0 : index
      %c0_39 = arith.constant 0 : index
      %31 = vector.load %arg7[%c0_38, %c0_39] : memref<16x32xf32, #tpu.memory_space<vmem>>, vector<16x32xf32>
      tpu.vector_store %arg7[%c0_38, %c0_39], %30 {strides = array<i32>} : memref<16x32xf32, #tpu.memory_space<vmem>>, vector<16x32xf32>,
    } else {
    }
    %c0 = arith.constant 0 : index
    %c0_1 = arith.constant 0 : index
    %c0_2 = arith.constant 0 : index
    %c0_3 = arith.constant 0 : index
    %3 = vector.load %arg3[%c0, %c0_1, %c0_2, %c0_3] : memref<1x1x18x4xbf16, #tpu.memory_space<vmem>>, vector<1x1x16x4xbf16>
    %4 = vector.shape_cast %3 : vector<1x1x16x4xbf16> to vector<16x4xbf16>
    %c0_4 = arith.constant 0 : index
    %c0_5 = arith.constant 0 : index
    %5 = vector.load %arg7[%c0_4, %c0_5] : memref<16x32xf32, #tpu.memory_space<vmem>>, vector<16x32xf32>
    %c0_6 = arith.constant 0 : index
    %c0_7 = arith.constant 0 : index
    %c0_8 = arith.constant 0 : index
    %c0_9 = arith.constant 0 : index
    %6 = vector.load %arg4[%c0_6, %c0_7, %c0_8, %c0_9] : memref<1x3x4x32xbf16, #tpu.memory_space<vmem>>, vector<1x1x4x32xbf16>
    %7 = vector.shape_cast %6 : vector<1x1x4x32xbf16> to vector<4x32xbf16>
    %cst = arith.constant dense<0.000000e+00> : vector<16x32xf32>
    %8 = tpu.matmul %4, %7, %cst {dimension_numbers = #tpu.dot_dimension_numbers<[1], [0], [0], [1], [0, 0, 1, 1], [], []>} : vector<16x4xbf16>, vector<4x32xbf16>, vector<16x32xf32> -> vector<16x32xf32>
    %9 = arith.addf %5, %8 : vector<16x32xf32>
    %c0_10 = arith.constant 0 : index
    %c0_11 = arith.constant 0 : index
    %10 = vector.load %arg7[%c0_10, %c0_11] : memref<16x32xf32, #tpu.memory_space<vmem>>, vector<16x32xf32>
    tpu.vector_store %arg7[%c0_10, %c0_11], %9 {strides = array<i32>} : memref<16x32xf32, #tpu.memory_space<vmem>>, vector<16x32xf32>,
    %c0_12 = arith.constant 0 : index
    %c0_13 = arith.constant 0 : index
    %c1 = arith.constant 1 : index
    %c0_14 = arith.constant 0 : index
    %11 = vector.load %arg3[%c0_12, %c0_13, %c1, %c0_14] : memref<1x1x18x4xbf16, #tpu.memory_space<vmem>>, vector<1x1x16x4xbf16>
    %12 = vector.shape_cast %11 : vector<1x1x16x4xbf16> to vector<16x4xbf16>
    %c0_15 = arith.constant 0 : index
    %c0_16 = arith.constant 0 : index
    %13 = vector.load %arg7[%c0_15, %c0_16] : memref<16x32xf32, #tpu.memory_space<vmem>>, vector<16x32xf32>
    %c0_17 = arith.constant 0 : index
    %c1_18 = arith.constant 1 : index
    %c0_19 = arith.constant 0 : index
    %c0_20 = arith.constant 0 : index
    %14 = vector.load %arg4[%c0_17, %c1_18, %c0_19, %c0_20] : memref<1x3x4x32xbf16, #tpu.memory_space<vmem>>, vector<1x1x4x32xbf16>
    %15 = vector.shape_cast %14 : vector<1x1x4x32xbf16> to vector<4x32xbf16>
    %cst_21 = arith.constant dense<0.000000e+00> : vector<16x32xf32>
    %16 = tpu.matmul %12, %15, %cst_21 {dimension_numbers = #tpu.dot_dimension_numbers<[1], [0], [0], [1], [0, 0, 1, 1], [], []>} : vector<16x4xbf16>, vector<4x32xbf16>, vector<16x32xf32> -> vector<16x32xf32>
    %17 = arith.addf %13, %16 : vector<16x32xf32>
    %c0_22 = arith.constant 0 : index
    %c0_23 = arith.constant 0 : index
    %18 = vector.load %arg7[%c0_22, %c0_23] : memref<16x32xf32, #tpu.memory_space<vmem>>, vector<16x32xf32>
    tpu.vector_store %arg7[%c0_22, %c0_23], %17 {strides = array<i32>} : memref<16x32xf32, #tpu.memory_space<vmem>>, vector<16x32xf32>,
    %c0_24 = arith.constant 0 : index
    %c0_25 = arith.constant 0 : index
    %c2 = arith.constant 2 : index
    %c0_26 = arith.constant 0 : index
    %19 = vector.load %arg3[%c0_24, %c0_25, %c2, %c0_26] : memref<1x1x18x4xbf16, #tpu.memory_space<vmem>>, vector<1x1x16x4xbf16>
    %20 = vector.shape_cast %19 : vector<1x1x16x4xbf16> to vector<16x4xbf16>
    %c0_27 = arith.constant 0 : index
    %c0_28 = arith.constant 0 : index
    %21 = vector.load %arg7[%c0_27, %c0_28] : memref<16x32xf32, #tpu.memory_space<vmem>>, vector<16x32xf32>
    %c0_29 = arith.constant 0 : index
    %c2_30 = arith.constant 2 : index
    %c0_31 = arith.constant 0 : index
    %c0_32 = arith.constant 0 : index
    %22 = vector.load %arg4[%c0_29, %c2_30, %c0_31, %c0_32] : memref<1x3x4x32xbf16, #tpu.memory_space<vmem>>, vector<1x1x4x32xbf16>
    %23 = vector.shape_cast %22 : vector<1x1x4x32xbf16> to vector<4x32xbf16>
    %cst_33 = arith.constant dense<0.000000e+00> : vector<16x32xf32>
    %24 = tpu.matmul %20, %23, %cst_33 {dimension_numbers = #tpu.dot_dimension_numbers<[1], [0], [0], [1], [0, 0, 1, 1], [], []>} : vector<16x4xbf16>, vector<4x32xbf16>, vector<16x32xf32> -> vector<16x32xf32>
    %25 = arith.addf %21, %24 : vector<16x32xf32>
    %c0_34 = arith.constant 0 : index
    %c0_35 = arith.constant 0 : index
    %26 = vector.load %arg7[%c0_34, %c0_35] : memref<16x32xf32, #tpu.memory_space<vmem>>, vector<16x32xf32>
    tpu.vector_store %arg7[%c0_34, %c0_35], %25 {strides = array<i32>} : memref<16x32xf32, #tpu.memory_space<vmem>>, vector<16x32xf32>,
    %c2_i32 = arith.constant 2 : i32
    %27 = arith.cmpi eq, %arg2, %c2_i32 : i32
    %28 = arith.extui %27 : i1 to i32
    %c0_i32_36 = arith.constant 0 : i32
    %29 = arith.cmpi ne, %28, %c0_i32_36 : i32
    scf.if %29 {
      %c0_37 = arith.constant 0 : index
      %c0_38 = arith.constant 0 : index
      %30 = vector.load %arg7[%c0_37, %c0_38] : memref<16x32xf32, #tpu.memory_space<vmem>>, vector<16x32xf32>
      %c0_39 = arith.constant 0 : index
      %c0_40 = arith.constant 0 : index
      %31 = vector.load %arg5[%c0_39, %c0_40] : memref<1x32xf32, #tpu.memory_space<vmem>>, vector<1x32xf32>
      %32 = vector.broadcast %31 : vector<1x32xf32> to vector<16x32xf32>
      %33 = arith.addf %30, %32 : vector<16x32xf32>
      %34 = vector.shape_cast %33 : vector<16x32xf32> to vector<1x1x16x32xf32>
      %c0_41 = arith.constant 0 : index
      %c0_42 = arith.constant 0 : index
      %c0_43 = arith.constant 0 : index
      %c0_44 = arith.constant 0 : index
      %35 = vector.load %arg6[%c0_41, %c0_42, %c0_43, %c0_44] : memref<1x1x16x32xf32, #tpu.memory_space<vmem>>, vector<1x1x16x32xf32>
      tpu.vector_store %arg6[%c0_41, %c0_42, %c0_43, %c0_44], %34 {strides = array<i32>} : memref<1x1x16x32xf32, #tpu.memory_space<vmem>>, vector<1x1x16x32xf32>,
    } else {
    }
    return
  }
  func.func @transform_0(%arg0: i32, %arg1: i32, %arg2: i32) -> (i32, i32, i32, i32) {
    %c1_i32 = arith.constant 1 : i32
    %0 = arith.muli %arg1, %c1_i32 : i32
    %1 = arith.addi %0, %arg2 : i32
    %c0_i32 = arith.constant 0 : i32
    %c0_i32_0 = arith.constant 0 : i32
    %c0_i32_1 = arith.constant 0 : i32
    return %arg0, %1, %c0_i32, %c0_i32_0 : i32, i32, i32, i32
  }
  func.func @transform_1(%arg0: i32, %arg1: i32, %arg2: i32) -> (i32, i32, i32, i32) {
    %c0_i32 = arith.constant 0 : i32
    %c0_i32_0 = arith.constant 0 : i32
    %c0_i32_1 = arith.constant 0 : i32
    %c0_i32_2 = arith.constant 0 : i32
    return %arg2, %c0_i32, %c0_i32_0, %c0_i32_1 : i32, i32, i32, i32
  }
  func.func @transform_2(%arg0: i32, %arg1: i32, %arg2: i32) -> (i32, i32) {
    %c0_i32 = arith.constant 0 : i32
    %c0_i32_0 = arith.constant 0 : i32
    %c0_i32_1 = arith.constant 0 : i32
    return %c0_i32, %c0_i32_0 : i32, i32
  }
  func.func @transform_3(%arg0: i32, %arg1: i32, %arg2: i32) -> (i32, i32, i32, i32) {
    %c0_i32 = arith.constant 0 : i32
    %c0_i32_0 = arith.constant 0 : i32
    %c0_i32_1 = arith.constant 0 : i32
    return %arg0, %arg1, %c0_i32, %c0_i32_0 : i32, i32, i32, i32
  }
}

module attributes {stable_mosaic.version = 11 : i64} {
  func.func @_affine_leaky_kernel(%arg0: i32, %arg1: memref<512x32xf32, #tpu.memory_space<vmem>>, %arg2: memref<1x32xf32, #tpu.memory_space<vmem>>, %arg3: memref<1x32xf32, #tpu.memory_space<vmem>>, %arg4: memref<512x32xf32, #tpu.memory_space<vmem>>) attributes {dimension_semantics = [#tpu.dimension_semantics<parallel>], iteration_bounds = array<i64: 1>, scalar_prefetch = 0 : i64, scratch_operands = 0 : i64, tpu.core_type = #tpu.core_type<tc>, window_params = [{transform_indices = @transform_0, window_bounds = array<i64: 512, 32>}, {pipeline_mode = #tpu.pipeline_mode<synchronous>, transform_indices = @transform_1, window_bounds = array<i64: 1, 32>}, {pipeline_mode = #tpu.pipeline_mode<synchronous>, transform_indices = @transform_2, window_bounds = array<i64: 1, 32>}, {transform_indices = @transform_3, window_bounds = array<i64: 512, 32>}]} {
    %c0 = arith.constant 0 : index
    %c0_0 = arith.constant 0 : index
    %0 = vector.load %arg1[%c0, %c0_0] : memref<512x32xf32, #tpu.memory_space<vmem>>, vector<512x32xf32>
    %c0_1 = arith.constant 0 : index
    %c0_2 = arith.constant 0 : index
    %1 = vector.load %arg2[%c0_1, %c0_2] : memref<1x32xf32, #tpu.memory_space<vmem>>, vector<1x32xf32>
    %2 = vector.broadcast %1 : vector<1x32xf32> to vector<512x32xf32>
    %3 = arith.mulf %0, %2 : vector<512x32xf32>
    %c0_3 = arith.constant 0 : index
    %c0_4 = arith.constant 0 : index
    %4 = vector.load %arg3[%c0_3, %c0_4] : memref<1x32xf32, #tpu.memory_space<vmem>>, vector<1x32xf32>
    %5 = vector.broadcast %4 : vector<1x32xf32> to vector<512x32xf32>
    %6 = arith.addf %3, %5 : vector<512x32xf32>
    %cst = arith.constant 1.000000e-01 : f32
    %7 = vector.broadcast %cst : f32 to vector<512x32xf32>
    %8 = arith.mulf %7, %6 : vector<512x32xf32>
    %9 = arith.maximumf %6, %8 : vector<512x32xf32>
    %c0_5 = arith.constant 0 : index
    %c0_6 = arith.constant 0 : index
    %10 = vector.load %arg4[%c0_5, %c0_6] : memref<512x32xf32, #tpu.memory_space<vmem>>, vector<512x32xf32>
    tpu.vector_store %arg4[%c0_5, %c0_6], %9 {strides = array<i32>} : memref<512x32xf32, #tpu.memory_space<vmem>>, vector<512x32xf32>,
    return
  }
  func.func @transform_0(%arg0: i32) -> (i32, i32) {
    %c0_i32 = arith.constant 0 : i32
    %c0_i32_0 = arith.constant 0 : i32
    return %arg0, %c0_i32 : i32, i32
  }
  func.func @transform_1(%arg0: i32) -> (i32, i32) {
    %c0_i32 = arith.constant 0 : i32
    %c0_i32_0 = arith.constant 0 : i32
    %c0_i32_1 = arith.constant 0 : i32
    return %c0_i32, %c0_i32_0 : i32, i32
  }
  func.func @transform_2(%arg0: i32) -> (i32, i32) {
    %c0_i32 = arith.constant 0 : i32
    %c0_i32_0 = arith.constant 0 : i32
    %c0_i32_1 = arith.constant 0 : i32
    return %c0_i32, %c0_i32_0 : i32, i32
  }
  func.func @transform_3(%arg0: i32) -> (i32, i32) {
    %c0_i32 = arith.constant 0 : i32
    %c0_i32_0 = arith.constant 0 : i32
    return %arg0, %c0_i32 : i32, i32
  }
}

module attributes {stable_mosaic.version = 11 : i64} {
  func.func @_conv_kernel(%arg0: i32, %arg1: i32, %arg2: i32, %arg3: memref<1x1x9x64xbf16, #tpu.memory_space<vmem>>, %arg4: memref<1x3x32x64xbf16, #tpu.memory_space<vmem>>, %arg5: memref<1x64xf32, #tpu.memory_space<vmem>>, %arg6: memref<1x1x8x64xf32, #tpu.memory_space<vmem>>, %arg7: memref<8x64xf32, #tpu.memory_space<vmem>>) attributes {dimension_semantics = [#tpu.dimension_semantics<parallel>, #tpu.dimension_semantics<parallel>, #tpu.dimension_semantics<arbitrary>], iteration_bounds = array<i64: 2, 8, 3>, scalar_prefetch = 0 : i64, scratch_operands = 1 : i64, tpu.core_type = #tpu.core_type<tc>, window_params = [{transform_indices = @transform_0, window_bounds = array<i64: 1, 1, 9, 64>}, {transform_indices = @transform_1, window_bounds = array<i64: 1, 3, 32, 64>}, {pipeline_mode = #tpu.pipeline_mode<synchronous>, transform_indices = @transform_2, window_bounds = array<i64: 1, 64>}, {transform_indices = @transform_3, window_bounds = array<i64: 1, 1, 8, 64>}]} {
    %c0_i32 = arith.constant 0 : i32
    %0 = arith.cmpi eq, %arg2, %c0_i32 : i32
    %1 = arith.extui %0 : i1 to i32
    %c0_i32_0 = arith.constant 0 : i32
    %2 = arith.cmpi ne, %1, %c0_i32_0 : i32
    scf.if %2 {
      %cst_36 = arith.constant 0.000000e+00 : f32
      %30 = vector.broadcast %cst_36 : f32 to vector<8x64xf32>
      %c0_37 = arith.constant 0 : index
      %c0_38 = arith.constant 0 : index
      %31 = vector.load %arg7[%c0_37, %c0_38] : memref<8x64xf32, #tpu.memory_space<vmem>>, vector<8x64xf32>
      tpu.vector_store %arg7[%c0_37, %c0_38], %30 {strides = array<i32>} : memref<8x64xf32, #tpu.memory_space<vmem>>, vector<8x64xf32>,
    } else {
    }
    %c0 = arith.constant 0 : index
    %c0_1 = arith.constant 0 : index
    %c0_2 = arith.constant 0 : index
    %c0_3 = arith.constant 0 : index
    %3 = vector.load %arg3[%c0, %c0_1, %c0_2, %c0_3] : memref<1x1x9x64xbf16, #tpu.memory_space<vmem>>, vector<1x1x8x32xbf16>
    %4 = vector.shape_cast %3 : vector<1x1x8x32xbf16> to vector<8x32xbf16>
    %c0_4 = arith.constant 0 : index
    %c0_5 = arith.constant 0 : index
    %5 = vector.load %arg7[%c0_4, %c0_5] : memref<8x64xf32, #tpu.memory_space<vmem>>, vector<8x64xf32>
    %c0_6 = arith.constant 0 : index
    %c0_7 = arith.constant 0 : index
    %c0_8 = arith.constant 0 : index
    %c0_9 = arith.constant 0 : index
    %6 = vector.load %arg4[%c0_6, %c0_7, %c0_8, %c0_9] : memref<1x3x32x64xbf16, #tpu.memory_space<vmem>>, vector<1x1x32x64xbf16>
    %7 = vector.shape_cast %6 : vector<1x1x32x64xbf16> to vector<32x64xbf16>
    %cst = arith.constant dense<0.000000e+00> : vector<8x64xf32>
    %8 = tpu.matmul %4, %7, %cst {dimension_numbers = #tpu.dot_dimension_numbers<[1], [0], [0], [1], [0, 0, 1, 1], [], []>} : vector<8x32xbf16>, vector<32x64xbf16>, vector<8x64xf32> -> vector<8x64xf32>
    %9 = arith.addf %5, %8 : vector<8x64xf32>
    %c0_10 = arith.constant 0 : index
    %c0_11 = arith.constant 0 : index
    %10 = vector.load %arg7[%c0_10, %c0_11] : memref<8x64xf32, #tpu.memory_space<vmem>>, vector<8x64xf32>
    tpu.vector_store %arg7[%c0_10, %c0_11], %9 {strides = array<i32>} : memref<8x64xf32, #tpu.memory_space<vmem>>, vector<8x64xf32>,
    %c0_12 = arith.constant 0 : index
    %c0_13 = arith.constant 0 : index
    %c0_14 = arith.constant 0 : index
    %c32 = arith.constant 32 : index
    %11 = vector.load %arg3[%c0_12, %c0_13, %c0_14, %c32] : memref<1x1x9x64xbf16, #tpu.memory_space<vmem>>, vector<1x1x8x32xbf16>
    %12 = vector.shape_cast %11 : vector<1x1x8x32xbf16> to vector<8x32xbf16>
    %c0_15 = arith.constant 0 : index
    %c0_16 = arith.constant 0 : index
    %13 = vector.load %arg7[%c0_15, %c0_16] : memref<8x64xf32, #tpu.memory_space<vmem>>, vector<8x64xf32>
    %c0_17 = arith.constant 0 : index
    %c1 = arith.constant 1 : index
    %c0_18 = arith.constant 0 : index
    %c0_19 = arith.constant 0 : index
    %14 = vector.load %arg4[%c0_17, %c1, %c0_18, %c0_19] : memref<1x3x32x64xbf16, #tpu.memory_space<vmem>>, vector<1x1x32x64xbf16>
    %15 = vector.shape_cast %14 : vector<1x1x32x64xbf16> to vector<32x64xbf16>
    %cst_20 = arith.constant dense<0.000000e+00> : vector<8x64xf32>
    %16 = tpu.matmul %12, %15, %cst_20 {dimension_numbers = #tpu.dot_dimension_numbers<[1], [0], [0], [1], [0, 0, 1, 1], [], []>} : vector<8x32xbf16>, vector<32x64xbf16>, vector<8x64xf32> -> vector<8x64xf32>
    %17 = arith.addf %13, %16 : vector<8x64xf32>
    %c0_21 = arith.constant 0 : index
    %c0_22 = arith.constant 0 : index
    %18 = vector.load %arg7[%c0_21, %c0_22] : memref<8x64xf32, #tpu.memory_space<vmem>>, vector<8x64xf32>
    tpu.vector_store %arg7[%c0_21, %c0_22], %17 {strides = array<i32>} : memref<8x64xf32, #tpu.memory_space<vmem>>, vector<8x64xf32>,
    %c0_23 = arith.constant 0 : index
    %c0_24 = arith.constant 0 : index
    %c1_25 = arith.constant 1 : index
    %c0_26 = arith.constant 0 : index
    %19 = vector.load %arg3[%c0_23, %c0_24, %c1_25, %c0_26] : memref<1x1x9x64xbf16, #tpu.memory_space<vmem>>, vector<1x1x8x32xbf16>
    %20 = vector.shape_cast %19 : vector<1x1x8x32xbf16> to vector<8x32xbf16>
    %c0_27 = arith.constant 0 : index
    %c0_28 = arith.constant 0 : index
    %21 = vector.load %arg7[%c0_27, %c0_28] : memref<8x64xf32, #tpu.memory_space<vmem>>, vector<8x64xf32>
    %c0_29 = arith.constant 0 : index
    %c2 = arith.constant 2 : index
    %c0_30 = arith.constant 0 : index
    %c0_31 = arith.constant 0 : index
    %22 = vector.load %arg4[%c0_29, %c2, %c0_30, %c0_31] : memref<1x3x32x64xbf16, #tpu.memory_space<vmem>>, vector<1x1x32x64xbf16>
    %23 = vector.shape_cast %22 : vector<1x1x32x64xbf16> to vector<32x64xbf16>
    %cst_32 = arith.constant dense<0.000000e+00> : vector<8x64xf32>
    %24 = tpu.matmul %20, %23, %cst_32 {dimension_numbers = #tpu.dot_dimension_numbers<[1], [0], [0], [1], [0, 0, 1, 1], [], []>} : vector<8x32xbf16>, vector<32x64xbf16>, vector<8x64xf32> -> vector<8x64xf32>
    %25 = arith.addf %21, %24 : vector<8x64xf32>
    %c0_33 = arith.constant 0 : index
    %c0_34 = arith.constant 0 : index
    %26 = vector.load %arg7[%c0_33, %c0_34] : memref<8x64xf32, #tpu.memory_space<vmem>>, vector<8x64xf32>
    tpu.vector_store %arg7[%c0_33, %c0_34], %25 {strides = array<i32>} : memref<8x64xf32, #tpu.memory_space<vmem>>, vector<8x64xf32>,
    %c2_i32 = arith.constant 2 : i32
    %27 = arith.cmpi eq, %arg2, %c2_i32 : i32
    %28 = arith.extui %27 : i1 to i32
    %c0_i32_35 = arith.constant 0 : i32
    %29 = arith.cmpi ne, %28, %c0_i32_35 : i32
    scf.if %29 {
      %c0_36 = arith.constant 0 : index
      %c0_37 = arith.constant 0 : index
      %30 = vector.load %arg7[%c0_36, %c0_37] : memref<8x64xf32, #tpu.memory_space<vmem>>, vector<8x64xf32>
      %c0_38 = arith.constant 0 : index
      %c0_39 = arith.constant 0 : index
      %31 = vector.load %arg5[%c0_38, %c0_39] : memref<1x64xf32, #tpu.memory_space<vmem>>, vector<1x64xf32>
      %32 = vector.broadcast %31 : vector<1x64xf32> to vector<8x64xf32>
      %33 = arith.addf %30, %32 : vector<8x64xf32>
      %34 = vector.shape_cast %33 : vector<8x64xf32> to vector<1x1x8x64xf32>
      %c0_40 = arith.constant 0 : index
      %c0_41 = arith.constant 0 : index
      %c0_42 = arith.constant 0 : index
      %c0_43 = arith.constant 0 : index
      %35 = vector.load %arg6[%c0_40, %c0_41, %c0_42, %c0_43] : memref<1x1x8x64xf32, #tpu.memory_space<vmem>>, vector<1x1x8x64xf32>
      tpu.vector_store %arg6[%c0_40, %c0_41, %c0_42, %c0_43], %34 {strides = array<i32>} : memref<1x1x8x64xf32, #tpu.memory_space<vmem>>, vector<1x1x8x64xf32>,
    } else {
    }
    return
  }
  func.func @transform_0(%arg0: i32, %arg1: i32, %arg2: i32) -> (i32, i32, i32, i32) {
    %c2_i32 = arith.constant 2 : i32
    %0 = arith.muli %arg1, %c2_i32 : i32
    %1 = arith.addi %0, %arg2 : i32
    %c0_i32 = arith.constant 0 : i32
    %c0_i32_0 = arith.constant 0 : i32
    %c0_i32_1 = arith.constant 0 : i32
    return %arg0, %1, %c0_i32, %c0_i32_0 : i32, i32, i32, i32
  }
  func.func @transform_1(%arg0: i32, %arg1: i32, %arg2: i32) -> (i32, i32, i32, i32) {
    %c0_i32 = arith.constant 0 : i32
    %c0_i32_0 = arith.constant 0 : i32
    %c0_i32_1 = arith.constant 0 : i32
    %c0_i32_2 = arith.constant 0 : i32
    return %arg2, %c0_i32, %c0_i32_0, %c0_i32_1 : i32, i32, i32, i32
  }
  func.func @transform_2(%arg0: i32, %arg1: i32, %arg2: i32) -> (i32, i32) {
    %c0_i32 = arith.constant 0 : i32
    %c0_i32_0 = arith.constant 0 : i32
    %c0_i32_1 = arith.constant 0 : i32
    return %c0_i32, %c0_i32_0 : i32, i32
  }
  func.func @transform_3(%arg0: i32, %arg1: i32, %arg2: i32) -> (i32, i32, i32, i32) {
    %c0_i32 = arith.constant 0 : i32
    %c0_i32_0 = arith.constant 0 : i32
    %c0_i32_1 = arith.constant 0 : i32
    return %arg0, %arg1, %c0_i32, %c0_i32_0 : i32, i32, i32, i32
  }
}

module attributes {stable_mosaic.version = 11 : i64} {
  func.func @_conv_kernel(%arg0: i32, %arg1: i32, %arg2: i32, %arg3: memref<1x1x8x64xbf16, #tpu.memory_space<vmem>>, %arg4: memref<1x1x64x64xbf16, #tpu.memory_space<vmem>>, %arg5: memref<1x64xf32, #tpu.memory_space<vmem>>, %arg6: memref<1x1x8x64xf32, #tpu.memory_space<vmem>>, %arg7: memref<8x64xf32, #tpu.memory_space<vmem>>) attributes {dimension_semantics = [#tpu.dimension_semantics<parallel>, #tpu.dimension_semantics<parallel>, #tpu.dimension_semantics<arbitrary>], iteration_bounds = array<i64: 2, 8, 1>, scalar_prefetch = 0 : i64, scratch_operands = 1 : i64, tpu.core_type = #tpu.core_type<tc>, window_params = [{transform_indices = @transform_0, window_bounds = array<i64: 1, 1, 8, 64>}, {transform_indices = @transform_1, window_bounds = array<i64: 1, 1, 64, 64>}, {pipeline_mode = #tpu.pipeline_mode<synchronous>, transform_indices = @transform_2, window_bounds = array<i64: 1, 64>}, {transform_indices = @transform_3, window_bounds = array<i64: 1, 1, 8, 64>}]} {
    %c0_i32 = arith.constant 0 : i32
    %0 = arith.cmpi eq, %arg2, %c0_i32 : i32
    %1 = arith.extui %0 : i1 to i32
    %c0_i32_0 = arith.constant 0 : i32
    %2 = arith.cmpi ne, %1, %c0_i32_0 : i32
    scf.if %2 {
      %cst_14 = arith.constant 0.000000e+00 : f32
      %14 = vector.broadcast %cst_14 : f32 to vector<8x64xf32>
      %c0_15 = arith.constant 0 : index
      %c0_16 = arith.constant 0 : index
      %15 = vector.load %arg7[%c0_15, %c0_16] : memref<8x64xf32, #tpu.memory_space<vmem>>, vector<8x64xf32>
      tpu.vector_store %arg7[%c0_15, %c0_16], %14 {strides = array<i32>} : memref<8x64xf32, #tpu.memory_space<vmem>>, vector<8x64xf32>,
    } else {
    }
    %c0 = arith.constant 0 : index
    %c0_1 = arith.constant 0 : index
    %c0_2 = arith.constant 0 : index
    %c0_3 = arith.constant 0 : index
    %3 = vector.load %arg3[%c0, %c0_1, %c0_2, %c0_3] : memref<1x1x8x64xbf16, #tpu.memory_space<vmem>>, vector<1x1x8x64xbf16>
    %4 = vector.shape_cast %3 : vector<1x1x8x64xbf16> to vector<8x64xbf16>
    %c0_4 = arith.constant 0 : index
    %c0_5 = arith.constant 0 : index
    %5 = vector.load %arg7[%c0_4, %c0_5] : memref<8x64xf32, #tpu.memory_space<vmem>>, vector<8x64xf32>
    %c0_6 = arith.constant 0 : index
    %c0_7 = arith.constant 0 : index
    %c0_8 = arith.constant 0 : index
    %c0_9 = arith.constant 0 : index
    %6 = vector.load %arg4[%c0_6, %c0_7, %c0_8, %c0_9] : memref<1x1x64x64xbf16, #tpu.memory_space<vmem>>, vector<1x1x64x64xbf16>
    %7 = vector.shape_cast %6 : vector<1x1x64x64xbf16> to vector<64x64xbf16>
    %cst = arith.constant dense<0.000000e+00> : vector<8x64xf32>
    %8 = tpu.matmul %4, %7, %cst {dimension_numbers = #tpu.dot_dimension_numbers<[1], [0], [0], [1], [0, 0, 1, 1], [], []>} : vector<8x64xbf16>, vector<64x64xbf16>, vector<8x64xf32> -> vector<8x64xf32>
    %9 = arith.addf %5, %8 : vector<8x64xf32>
    %c0_10 = arith.constant 0 : index
    %c0_11 = arith.constant 0 : index
    %10 = vector.load %arg7[%c0_10, %c0_11] : memref<8x64xf32, #tpu.memory_space<vmem>>, vector<8x64xf32>
    tpu.vector_store %arg7[%c0_10, %c0_11], %9 {strides = array<i32>} : memref<8x64xf32, #tpu.memory_space<vmem>>, vector<8x64xf32>,
    %c0_i32_12 = arith.constant 0 : i32
    %11 = arith.cmpi eq, %arg2, %c0_i32_12 : i32
    %12 = arith.extui %11 : i1 to i32
    %c0_i32_13 = arith.constant 0 : i32
    %13 = arith.cmpi ne, %12, %c0_i32_13 : i32
    scf.if %13 {
      %c0_14 = arith.constant 0 : index
      %c0_15 = arith.constant 0 : index
      %14 = vector.load %arg7[%c0_14, %c0_15] : memref<8x64xf32, #tpu.memory_space<vmem>>, vector<8x64xf32>
      %c0_16 = arith.constant 0 : index
      %c0_17 = arith.constant 0 : index
      %15 = vector.load %arg5[%c0_16, %c0_17] : memref<1x64xf32, #tpu.memory_space<vmem>>, vector<1x64xf32>
      %16 = vector.broadcast %15 : vector<1x64xf32> to vector<8x64xf32>
      %17 = arith.addf %14, %16 : vector<8x64xf32>
      %18 = vector.shape_cast %17 : vector<8x64xf32> to vector<1x1x8x64xf32>
      %c0_18 = arith.constant 0 : index
      %c0_19 = arith.constant 0 : index
      %c0_20 = arith.constant 0 : index
      %c0_21 = arith.constant 0 : index
      %19 = vector.load %arg6[%c0_18, %c0_19, %c0_20, %c0_21] : memref<1x1x8x64xf32, #tpu.memory_space<vmem>>, vector<1x1x8x64xf32>
      tpu.vector_store %arg6[%c0_18, %c0_19, %c0_20, %c0_21], %18 {strides = array<i32>} : memref<1x1x8x64xf32, #tpu.memory_space<vmem>>, vector<1x1x8x64xf32>,
    } else {
    }
    return
  }
  func.func @transform_0(%arg0: i32, %arg1: i32, %arg2: i32) -> (i32, i32, i32, i32) {
    %c1_i32 = arith.constant 1 : i32
    %0 = arith.muli %arg1, %c1_i32 : i32
    %1 = arith.addi %0, %arg2 : i32
    %c0_i32 = arith.constant 0 : i32
    %c0_i32_0 = arith.constant 0 : i32
    %c0_i32_1 = arith.constant 0 : i32
    return %arg0, %1, %c0_i32, %c0_i32_0 : i32, i32, i32, i32
  }
  func.func @transform_1(%arg0: i32, %arg1: i32, %arg2: i32) -> (i32, i32, i32, i32) {
    %c0_i32 = arith.constant 0 : i32
    %c0_i32_0 = arith.constant 0 : i32
    %c0_i32_1 = arith.constant 0 : i32
    %c0_i32_2 = arith.constant 0 : i32
    return %arg2, %c0_i32, %c0_i32_0, %c0_i32_1 : i32, i32, i32, i32
  }
  func.func @transform_2(%arg0: i32, %arg1: i32, %arg2: i32) -> (i32, i32) {
    %c0_i32 = arith.constant 0 : i32
    %c0_i32_0 = arith.constant 0 : i32
    %c0_i32_1 = arith.constant 0 : i32
    return %c0_i32, %c0_i32_0 : i32, i32
  }
  func.func @transform_3(%arg0: i32, %arg1: i32, %arg2: i32) -> (i32, i32, i32, i32) {
    %c0_i32 = arith.constant 0 : i32
    %c0_i32_0 = arith.constant 0 : i32
    %c0_i32_1 = arith.constant 0 : i32
    return %arg0, %arg1, %c0_i32, %c0_i32_0 : i32, i32, i32, i32
  }
}

module attributes {stable_mosaic.version = 11 : i64} {
  func.func @_affine_leaky_kernel(%arg0: i32, %arg1: memref<128x64xf32, #tpu.memory_space<vmem>>, %arg2: memref<1x64xf32, #tpu.memory_space<vmem>>, %arg3: memref<1x64xf32, #tpu.memory_space<vmem>>, %arg4: memref<128x64xf32, #tpu.memory_space<vmem>>) attributes {dimension_semantics = [#tpu.dimension_semantics<parallel>], iteration_bounds = array<i64: 1>, scalar_prefetch = 0 : i64, scratch_operands = 0 : i64, tpu.core_type = #tpu.core_type<tc>, window_params = [{transform_indices = @transform_0, window_bounds = array<i64: 128, 64>}, {pipeline_mode = #tpu.pipeline_mode<synchronous>, transform_indices = @transform_1, window_bounds = array<i64: 1, 64>}, {pipeline_mode = #tpu.pipeline_mode<synchronous>, transform_indices = @transform_2, window_bounds = array<i64: 1, 64>}, {transform_indices = @transform_3, window_bounds = array<i64: 128, 64>}]} {
    %c0 = arith.constant 0 : index
    %c0_0 = arith.constant 0 : index
    %0 = vector.load %arg1[%c0, %c0_0] : memref<128x64xf32, #tpu.memory_space<vmem>>, vector<128x64xf32>
    %c0_1 = arith.constant 0 : index
    %c0_2 = arith.constant 0 : index
    %1 = vector.load %arg2[%c0_1, %c0_2] : memref<1x64xf32, #tpu.memory_space<vmem>>, vector<1x64xf32>
    %2 = vector.broadcast %1 : vector<1x64xf32> to vector<128x64xf32>
    %3 = arith.mulf %0, %2 : vector<128x64xf32>
    %c0_3 = arith.constant 0 : index
    %c0_4 = arith.constant 0 : index
    %4 = vector.load %arg3[%c0_3, %c0_4] : memref<1x64xf32, #tpu.memory_space<vmem>>, vector<1x64xf32>
    %5 = vector.broadcast %4 : vector<1x64xf32> to vector<128x64xf32>
    %6 = arith.addf %3, %5 : vector<128x64xf32>
    %cst = arith.constant 1.000000e-01 : f32
    %7 = vector.broadcast %cst : f32 to vector<128x64xf32>
    %8 = arith.mulf %7, %6 : vector<128x64xf32>
    %9 = arith.maximumf %6, %8 : vector<128x64xf32>
    %c0_5 = arith.constant 0 : index
    %c0_6 = arith.constant 0 : index
    %10 = vector.load %arg4[%c0_5, %c0_6] : memref<128x64xf32, #tpu.memory_space<vmem>>, vector<128x64xf32>
    tpu.vector_store %arg4[%c0_5, %c0_6], %9 {strides = array<i32>} : memref<128x64xf32, #tpu.memory_space<vmem>>, vector<128x64xf32>,
    return
  }
  func.func @transform_0(%arg0: i32) -> (i32, i32) {
    %c0_i32 = arith.constant 0 : i32
    %c0_i32_0 = arith.constant 0 : i32
    return %arg0, %c0_i32 : i32, i32
  }
  func.func @transform_1(%arg0: i32) -> (i32, i32) {
    %c0_i32 = arith.constant 0 : i32
    %c0_i32_0 = arith.constant 0 : i32
    %c0_i32_1 = arith.constant 0 : i32
    return %c0_i32, %c0_i32_0 : i32, i32
  }
  func.func @transform_2(%arg0: i32) -> (i32, i32) {
    %c0_i32 = arith.constant 0 : i32
    %c0_i32_0 = arith.constant 0 : i32
    %c0_i32_1 = arith.constant 0 : i32
    return %c0_i32, %c0_i32_0 : i32, i32
  }
  func.func @transform_3(%arg0: i32) -> (i32, i32) {
    %c0_i32 = arith.constant 0 : i32
    %c0_i32_0 = arith.constant 0 : i32
    return %arg0, %c0_i32 : i32, i32
  }
}

module attributes {stable_mosaic.version = 11 : i64} {
  func.func @_affine_leaky_kernel(%arg0: i32, %arg1: memref<128x64xf32, #tpu.memory_space<vmem>>, %arg2: memref<1x64xf32, #tpu.memory_space<vmem>>, %arg3: memref<1x64xf32, #tpu.memory_space<vmem>>, %arg4: memref<128x64xf32, #tpu.memory_space<vmem>>) attributes {dimension_semantics = [#tpu.dimension_semantics<parallel>], iteration_bounds = array<i64: 1>, scalar_prefetch = 0 : i64, scratch_operands = 0 : i64, tpu.core_type = #tpu.core_type<tc>, window_params = [{transform_indices = @transform_0, window_bounds = array<i64: 128, 64>}, {pipeline_mode = #tpu.pipeline_mode<synchronous>, transform_indices = @transform_1, window_bounds = array<i64: 1, 64>}, {pipeline_mode = #tpu.pipeline_mode<synchronous>, transform_indices = @transform_2, window_bounds = array<i64: 1, 64>}, {transform_indices = @transform_3, window_bounds = array<i64: 128, 64>}]} {
    %c0 = arith.constant 0 : index
    %c0_0 = arith.constant 0 : index
    %0 = vector.load %arg1[%c0, %c0_0] : memref<128x64xf32, #tpu.memory_space<vmem>>, vector<128x64xf32>
    %c0_1 = arith.constant 0 : index
    %c0_2 = arith.constant 0 : index
    %1 = vector.load %arg2[%c0_1, %c0_2] : memref<1x64xf32, #tpu.memory_space<vmem>>, vector<1x64xf32>
    %2 = vector.broadcast %1 : vector<1x64xf32> to vector<128x64xf32>
    %3 = arith.mulf %0, %2 : vector<128x64xf32>
    %c0_3 = arith.constant 0 : index
    %c0_4 = arith.constant 0 : index
    %4 = vector.load %arg3[%c0_3, %c0_4] : memref<1x64xf32, #tpu.memory_space<vmem>>, vector<1x64xf32>
    %5 = vector.broadcast %4 : vector<1x64xf32> to vector<128x64xf32>
    %6 = arith.addf %3, %5 : vector<128x64xf32>
    %cst = arith.constant 1.000000e-01 : f32
    %7 = vector.broadcast %cst : f32 to vector<128x64xf32>
    %8 = arith.mulf %7, %6 : vector<128x64xf32>
    %9 = arith.maximumf %6, %8 : vector<128x64xf32>
    %c0_5 = arith.constant 0 : index
    %c0_6 = arith.constant 0 : index
    %10 = vector.load %arg4[%c0_5, %c0_6] : memref<128x64xf32, #tpu.memory_space<vmem>>, vector<128x64xf32>
    tpu.vector_store %arg4[%c0_5, %c0_6], %9 {strides = array<i32>} : memref<128x64xf32, #tpu.memory_space<vmem>>, vector<128x64xf32>,
    return
  }
  func.func @transform_0(%arg0: i32) -> (i32, i32) {
    %c0_i32 = arith.constant 0 : i32
    %c0_i32_0 = arith.constant 0 : i32
    return %arg0, %c0_i32 : i32, i32
  }
  func.func @transform_1(%arg0: i32) -> (i32, i32) {
    %c0_i32 = arith.constant 0 : i32
    %c0_i32_0 = arith.constant 0 : i32
    %c0_i32_1 = arith.constant 0 : i32
    return %c0_i32, %c0_i32_0 : i32, i32
  }
  func.func @transform_2(%arg0: i32) -> (i32, i32) {
    %c0_i32 = arith.constant 0 : i32
    %c0_i32_0 = arith.constant 0 : i32
    %c0_i32_1 = arith.constant 0 : i32
    return %c0_i32, %c0_i32_0 : i32, i32
  }
  func.func @transform_3(%arg0: i32) -> (i32, i32) {
    %c0_i32 = arith.constant 0 : i32
    %c0_i32_0 = arith.constant 0 : i32
    return %arg0, %c0_i32 : i32, i32
  }
}

</mosaic_0001>

<llo_original>
// kernel: sequential_nchw.6
$region0: #{sequential_nchw.6}
  #allocation0 [shape = 'u32[]', space=smem, size = 0x4, offset = 0x4, fixed_abs, tag = 'smem constant byte address 0x4 - core index']
  #allocation1 [shape = 'u32[144,128]{1,0:T(1,128)}', space=vmem, size = 0x12000, scoped, tag = 'internal scratch']
  #allocation2 [shape = 'f32[16,32]{1,0:T(8,128)}', space=vmem, size = 0x2000, scoped, tag = 'scratch operand']
  %s0 = inlined_call_operand.vmem [shape: bf16[2,18,18,4], index: 0, kind: input, shape index: {}]
  %s1 = inlined_call_operand.vmem [shape: bf16[3,3,4,32], index: 1, kind: input, shape index: {}]
  %s2 = inlined_call_operand.vmem [shape: f32[1,32], index: 2, kind: input, shape index: {}]
  %s3 = inlined_call_operand.vmem [shape: f32[2,16,16,32], index: 3, kind: output, shape index: {}]
  %s4 = sld [smem:[#allocation0]]
  $region53: #{sequential_nchw.6} parent=0
    _
  %s6 = ssub.s32 1, %s4
  %s7 = scalar_select 0, %s6, %s4
  loop: start=0, step=1, limit=98
  $region2: #{sequential_nchw.6} parent=0 // loop_pre_header
    _
  $region3: #{sequential_nchw.6} parent=0 // loop_header
    %s9 = sphi 0, %s13
    %p10 = scmp.ge.s32.totalorder %s9, 98
    %s16 = sphi 0, %s35
    %s17 = sphi 0, %s31
    %s18 = sphi 0, %s27
    %s19 = sphi 0, %s16
    %s20 = sphi 0, %s17
    %s21 = sphi 0, %s18
    %s22 = sphi 0, %s19
    %s23 = sphi 0, %s20
    %s24 = sphi 0, %s21
    %s42 = sphi 0, %s44
    %s45 = sphi 0, %s42
    %s46 = sphi 0, %s45
    %s62 = sphi 0, %s46
    %s68 = sphi 0, %s70
    %s71 = sphi 0, %s68
    %s72 = sphi 0, %s71
    %s88 = sphi 0, %s72
    %s92 = sphi 0, %s92
    %s94 = sphi 0, %s92
    %s95 = sphi 0, %s94
    %s109 = sphi 0, %s95
    %s117 = sphi 0, %s119
    %s120 = sphi 0, %s117
    %s121 = sphi 0, %s120
    %s137 = sphi 0, %s121
  $region4: #{sequential_nchw.6} parent=0 // loop_header_branch
    %12 = sbr.rel (%p10) target = $region8
  $region5: #{sequential_nchw.6} parent=0 // loop_body
    %s14 = ssub.s32 %s9, 1
    %s15 = ssub.s32 %s9, 2
    %s25 = sadd.s32 1, %s18
    %p26 = scmp.ge.s32.totalorder %s25, 3
    %s27 = scalar_select %p26, 0, %s25
    %s28 = sadd.s32 1, %s17
    %s29 = scalar_select %p26, %s28, %s17
    %p30 = scmp.ge.s32.totalorder %s29, 16
    %s31 = scalar_select %p30, 0, %s29
    %s32 = sadd.s32 1, %s16
    %s33 = scalar_select %p30, %s32, %s16
    %p34 = scmp.ge.s32.totalorder %s33, 2
    %s35 = scalar_select %p34, 0, %s33
    %s36 = sadd.s32 %s17, %s18
    %s37 = sadd.s32 %s31, %s27
    %s38 = ssub.s32 %s16, %s35
    %s39 = ssub.s32 %s36, %s37
    %s40 = sor.u32 %s38, %s39
    %p41 = scmp.eq.s32.totalorder %s40, 0
    %s43 = sadd.s32 %s42, 1
    %s44 = scalar_select %p41, %s42, %s43
    %p47 = pneg %p41
    %p48 = scmp.eq.s32.totalorder %s9, 95
    %p49 = por %p47, %p48
    %p50 = scmp.ne.s32.totalorder %s42, %s45
    %p51 = scmp.eq.s32.totalorder %s9, 0
    %p52 = por %p50, %p51
    %p53 = scmp.ne.s32.totalorder %s42, %s45
    %p54 = scmp.eq.s32.totalorder %s14, 95
    %p55 = por %p53, %p54
    %p56 = scmp.ne.s32.totalorder %s45, %s46
    %p57 = scmp.eq.s32.totalorder %s14, 0
    %p58 = por %p56, %p57
    %p59 = scmp.ne.s32.totalorder %s45, %s46
    %p60 = scmp.eq.s32.totalorder %s15, 95
    %p61 = por %p59, %p60
    %p63 = scmp.ne.s32.totalorder %s46, %s62
    %p64 = scmp.eq.s32.totalorder %s15, 0
    %p65 = por %p63, %p64
    %s66 = ssub.s32 %s18, %s27
    %p67 = scmp.eq.s32.totalorder %s66, 0
    %s69 = sadd.s32 %s68, 1
    %s70 = scalar_select %p67, %s68, %s69
    %p73 = pneg %p67
    %p74 = scmp.eq.s32.totalorder %s9, 95
    %p75 = por %p73, %p74
    %p76 = scmp.ne.s32.totalorder %s68, %s71
    %p77 = scmp.eq.s32.totalorder %s9, 0
    %p78 = por %p76, %p77
    %p79 = scmp.ne.s32.totalorder %s68, %s71
    %p80 = scmp.eq.s32.totalorder %s14, 95
    %p81 = por %p79, %p80
    %p82 = scmp.ne.s32.totalorder %s71, %s72
    %p83 = scmp.eq.s32.totalorder %s14, 0
    %p84 = por %p82, %p83
    %p85 = scmp.ne.s32.totalorder %s71, %s72
    %p86 = scmp.eq.s32.totalorder %s15, 95
    %p87 = por %p85, %p86
    %p89 = scmp.ne.s32.totalorder %s72, %s88
    %p90 = scmp.eq.s32.totalorder %s15, 0
    %p91 = por %p89, %p90
    %s93 = sadd.s32 %s92, 1
    %p96 = scmp.eq.s32.totalorder %s9, 95
    %p97 = scmp.ne.s32.totalorder %s92, %s94
    %p98 = scmp.eq.s32.totalorder %s9, 0
    %p99 = por %p97, %p98
    %p100 = scmp.ne.s32.totalorder %s92, %s94
    %p101 = scmp.eq.s32.totalorder %s14, 95
    %p102 = por %p100, %p101
    %p103 = scmp.ne.s32.totalorder %s94, %s95
    %p104 = scmp.eq.s32.totalorder %s14, 0
    %p105 = por %p103, %p104
    %p106 = scmp.ne.s32.totalorder %s94, %s95
    %p107 = scmp.eq.s32.totalorder %s15, 95
    %p108 = por %p106, %p107
    %p110 = scmp.ne.s32.totalorder %s95, %s109
    %p111 = scmp.eq.s32.totalorder %s15, 0
    %p112 = por %p110, %p111
    %s113 = ssub.s32 %s16, %s35
    %s114 = ssub.s32 %s17, %s31
    %s115 = sor.u32 %s113, %s114
    %p116 = scmp.eq.s32.totalorder %s115, 0
    %s118 = sadd.s32 %s117, 1
    %s119 = scalar_select %p116, %s117, %s118
    %p122 = pneg %p116
    %p123 = scmp.eq.s32.totalorder %s9, 95
    %p124 = por %p122, %p123
    %p125 = scmp.ne.s32.totalorder %s117, %s120
    %p126 = scmp.eq.s32.totalorder %s9, 0
    %p127 = por %p125, %p126
    %p128 = scmp.ne.s32.totalorder %s117, %s120
    %p129 = scmp.eq.s32.totalorder %s14, 95
    %p130 = por %p128, %p129
    %p131 = scmp.ne.s32.totalorder %s120, %s121
    %p132 = scmp.eq.s32.totalorder %s14, 0
    %p133 = por %p131, %p132
    %p134 = scmp.ne.s32.totalorder %s120, %s121
    %p135 = scmp.eq.s32.totalorder %s15, 95
    %p136 = por %p134, %p135
    %p138 = scmp.ne.s32.totalorder %s121, %s137
    %p139 = scmp.eq.s32.totalorder %s15, 0
    %p140 = por %p138, %p139
    %p141 = scmp.le.s32.totalorder 1, %s9
    %p142 = scmp.lt.s32.totalorder %s9, 97
    %p143 = pnand %p141, %p142
    %p144 = pneg %p143
    // Predicated region
    $region9: #{sequential_nchw.6} parent=5 // pred_check
      _
    $region10: #{sequential_nchw.6} parent=5 // pred_check_branch
      %146 = sbr.rel (%p143) target = $region12
    $region11: #{sequential_nchw.6} parent=5 // pred_region
      %s147 = ssub.s32 %s9, 1
      // Predicated region
      $region13: #{sequential_nchw.6} parent=11 // pred_check
        %p148 = pneg %p105
      $region14: #{sequential_nchw.6} parent=11 // pred_check_branch
        %150 = sbr.rel (%p148) target = $region16
      $region15: #{sequential_nchw.6} parent=11 // pred_region
        _
      $region16: #{sequential_nchw.6} parent=11 // pred_fallthru
        _
    $region12: #{sequential_nchw.6} parent=5 // pred_fallthru
      _
    %p151 = scmp.lt.s32.totalorder %s9, 96
    // Predicated region
    $region17: #{sequential_nchw.6} parent=5 // pred_check
      %p152 = pneg %p151
    $region18: #{sequential_nchw.6} parent=5 // pred_check_branch
      %154 = sbr.rel (%p152) target = $region20
    $region19: #{sequential_nchw.6} parent=5 // pred_region
      // Predicated region
      $region21: #{sequential_nchw.6} parent=19 // pred_check
        %p155 = pneg %p52
      $region22: #{sequential_nchw.6} parent=19 // pred_check_branch
        %157 = sbr.rel (%p155) target = $region24
      $region23: #{sequential_nchw.6} parent=19 // pred_region
        %s158 = sadd.s32 %s17, %s18
        %p159 = scmp.lt.s32.totalorder %s16, 1
        %s160 = scalar_select %p159, %s16, 1
        %p161 = scmp.lt.s32.totalorder %s158, 17
        %s162 = scalar_select %p161, %s158, 17
        %s163 = smul.addr %s162, 3
        %s164 = smul.addr %s160, 54
        %s165 = sadd.s32 %s163, %s164
        %s166 = smul.addr %s165, 4
        %s167 = scalar_lea.vmem %s0, %s166
        %s168 = sadd.s32 %s17, %s18
      $region24: #{sequential_nchw.6} parent=19 // pred_fallthru
        _
      // Predicated region
      $region25: #{sequential_nchw.6} parent=19 // pred_check
        %p169 = pneg %p78
      $region26: #{sequential_nchw.6} parent=19 // pred_check_branch
        %171 = sbr.rel (%p169) target = $region28
      $region27: #{sequential_nchw.6} parent=19 // pred_region
        %p172 = scmp.lt.s32.totalorder %s18, 2
        %s173 = scalar_select %p172, %s18, 2
        %s174 = smul.addr %s173, 3
        %s175 = smul.addr %s174, 2
        %s176 = scalar_lea.vmem %s1, %s175
      $region28: #{sequential_nchw.6} parent=19 // pred_fallthru
        _
    $region20: #{sequential_nchw.6} parent=5 // pred_fallthru
      _
    %p177 = scmp.le.s32.totalorder 1, %s9
    %p178 = scmp.lt.s32.totalorder %s9, 97
    %p179 = pnand %p177, %p178
    %p180 = pneg %p179
    // Predicated region
    $region29: #{sequential_nchw.6} parent=5 // pred_check
      _
    $region30: #{sequential_nchw.6} parent=5 // pred_check_branch
      %182 = sbr.rel (%p179) target = $region32
    $region31: #{sequential_nchw.6} parent=5 // pred_region
      %s183 = ssub.s32 %s9, 1
      %s184 = sadd.s32 %s20, %s21
      %p185 = scmp.lt.s32.totalorder %s19, 1
      %s186 = scalar_select %p185, %s19, 1
      %p187 = scmp.lt.s32.totalorder %s184, 17
      %s188 = scalar_select %p187, %s184, 17
      %s189 = smul.addr %s188, 3
      %s190 = smul.addr %s186, 54
      %s191 = sadd.s32 %s189, %s190
      %s192 = smul.addr %s191, 4
      %s193 = scalar_lea.vmem %s0, %s192
      %p194 = pneg %p58
      %p195 = pneg %p55
      %p196 = scmp.lt.s32.totalorder %s21, 2
      %s197 = scalar_select %p196, %s21, 2
      %s198 = smul.addr %s197, 3
      %s199 = smul.addr %s198, 2
      %s200 = scalar_lea.vmem %s1, %s199
      %p201 = pneg %p84
      %p202 = pneg %p81
      %p203 = pneg %p105
      %p204 = pneg %p102
      %p205 = pneg %p133
      %p206 = pneg %p130
      %p207 = scmp.lt.s32.totalorder %s19, 1
      %s208 = scalar_select %p207, %s19, 1
      %p209 = scmp.lt.s32.totalorder %s20, 15
      %s210 = scalar_select %p209, %s20, 15
      %s211 = smul.addr %s210, 2
      %s212 = smul.addr %s208, 32
      %s213 = sadd.s32 %s211, %s212
      %s214 = smul.addr %s213, 8
      %s215 = scalar_lea.vmem %s3, %s214
      %s216 = sadd.s32 %s20, %s21
      %p217 = scmp.lt.s32.totalorder %s19, 1
      %s218 = scalar_select %p217, %s19, 1
      %p219 = scmp.lt.s32.totalorder %s216, 17
      %s220 = scalar_select %p219, %s216, 17
      %s221 = smul.addr %s220, 3
      %s222 = smul.addr %s218, 54
      %s223 = sadd.s32 %s221, %s222
      %s224 = smul.addr %s223, 4
      %s225 = scalar_lea.vmem %s0, %s224
      %s226 = sadd.s32 %s20, %s21
      %p227 = scmp.lt.s32.totalorder %s21, 2
      %s228 = scalar_select %p227, %s21, 2
      %s229 = smul.addr %s228, 3
      %s230 = smul.addr %s229, 2
      %s231 = scalar_lea.vmem %s1, %s230
      %p232 = scmp.lt.s32.totalorder %s19, 1
      %s233 = scalar_select %p232, %s19, 1
      %p234 = scmp.lt.s32.totalorder %s20, 15
      %s235 = scalar_select %p234, %s20, 15
      %s236 = smul.addr %s235, 2
      %s237 = smul.addr %s233, 32
      %s238 = sadd.s32 %s236, %s237
      %s239 = smul.addr %s238, 8
      %s240 = scalar_lea.vmem %s3, %s239
      %p242 = scmp.eq.s32.totalorder %s21, 0
      // Predicated region
      $region33: #{sequential_nchw.6} parent=31 // pred_check
        %p243 = pneg %p242
      $region34: #{sequential_nchw.6} parent=31 // pred_check_branch
        %245 = sbr.rel (%p243) target = $region36
      $region35: #{sequential_nchw.6} parent=31 // pred_region
        %vm246 = vcmask 261120
        %247 = vst.msk [vmem:[#allocation2] sm:$0xff] %vm246, 0.0
        %248 = vst.msk [vmem:[#allocation2 + $0x8] sm:$0xff] %vm246, 0.0
      $region36: #{sequential_nchw.6} parent=31 // pred_fallthru
        _
      %v249 = vld [vmem:[%s225] sm:$0xf]
      %v250 = vld [vmem:[%s225 + $0x4] sm:$0xf]
      %v251 = vld [vmem:[#allocation2] sm:$0xff]
      %v252 = vld [vmem:[#allocation2 + $0x8] sm:$0xff]
      %v253 = vld [vmem:[%s231] sm:$0x3]
      %v256 = vunpack.c.l.b16 %v249
      %v257 = vunpack.c.l.b16 %v250
      %v258 = vpack.c.b16 %v257, %v256
      %vm259 = vcmask 31744
      %v261 = vsel %vm259, %v258, 0
      %vm263 = vcmask 1041408
      %v265 = vsel %vm263, %v253, 0
      %267 = vmatprep.subr.bf16.mxu0 0
      %268 = vmatpush1.bf16.msra.mxu0 %v265
      %269 = vmatprep.subr.bf16.mxu0 0
      %270 = vmatpush1.bf16.msra.mxu0 0
      %271 = vmatprep.subr.bf16.mxu0 0
      %272 = vmatpush1.bf16.msra.mxu0 0
      %273 = vmatprep.subr.bf16.mxu0 0
      %274 = vmatpush1.bf16.msra.mxu0 0
      %275 = vmatprep.subr.bf16.mxu0 0
      %276 = vmatpush1.bf16.msra.mxu0 0
      %277 = vmatprep.subr.bf16.mxu0 0
      %278 = vmatpush1.bf16.msra.mxu0 0
      %279 = vmatprep.subr.bf16.mxu0 0
      %280 = vmatpush1.bf16.msra.mxu0 0
      %281 = vmatprep.subr.bf16.mxu0 0
      %282 = vmatpush1.bf16.msra.mxu0 0
      %283 = vmatprep.subr.bf16.mxu0 0
      %284 = vmatpush1.bf16.msra.mxu0 0
      %285 = vmatprep.subr.bf16.mxu0 0
      %286 = vmatpush1.bf16.msra.mxu0 0
      %287 = vmatprep.subr.bf16.mxu0 0
      %288 = vmatpush1.bf16.msra.mxu0 0
      %289 = vmatprep.subr.bf16.mxu0 0
      %290 = vmatpush1.bf16.msra.mxu0 0
      %291 = vmatprep.subr.bf16.mxu0 0
      %292 = vmatpush1.bf16.msra.mxu0 0
      %293 = vmatprep.subr.bf16.mxu0 0
      %294 = vmatpush1.bf16.msra.mxu0 0
      %295 = vmatprep.subr.bf16.mxu0 0
      %296 = vmatpush1.bf16.msra.mxu0 0
      %297 = vmatprep.subr.bf16.mxu0 0
      %298 = vmatpush1.bf16.msra.mxu0 0
      %299 = vmatprep.mubr.bf16.mxu0 0
      %300 = vmatmul.mubr.bf16.gmra.mrb[0].mxu0 %v261
      %v301 = vpop.f32.mrb[0].mxu0
      %v302 = vadd.f32 0.0, %v301
      %v303 = vpop.f32.mrb[0].mxu0
      %v304 = vpop.f32.mrb[0].mxu0
      %v305 = vadd.f32 0.0, %v304
      %v306 = vpop.f32.mrb[0].mxu0
      %307 = vdwg.mxu0
      %v308 = vadd.f32 %v251, %v302
      %v309 = vadd.f32 %v252, %v305
      %vm310 = vcmask 261120
      %311 = vst.msk [vmem:[#allocation2] sm:$0xff] %vm310, %v308
      %312 = vst.msk [vmem:[#allocation2 + $0x8] sm:$0xff] %vm310, %v309
      %v313 = vld [vmem:[%s225] sm:$0xf]
      %v314 = vld [vmem:[%s225 + $0x4] sm:$0xf]
      %v315 = vld [vmem:[%s225 + $0x8] sm:$0x1]
      %v316 = vld [vmem:[#allocation2] sm:$0xff]
      %v317 = vld [vmem:[#allocation2 + $0x8] sm:$0xff]
      %s318 = scalar_lea.vmem %s231, 2
      %v319 = vld [vmem:[%s318] sm:$0x3]
      %v323 = vunpack.c.l.b16 %v313
      %v324 = vunpack.c.l.b16 %v314
      %v325 = vunpack.c.l.b16 %v315
      %v326 = vpack.c.b16 %v324, %v323
      %v327 = vpack.c.b16 %v325, %v325
      %vm328 = vsmask.f32 7424
      %v330 = vshrl.u32 %v326, 16
      %v332 = vshll.u32 %v326, 16
      %v334 = vrot.slane %v332, 1
      %v335 = vor.u32 %v330, %v334
      %v337 = vshll.u32 %v327, 16
      %v339 = vrot.slane %v337, 1
      %v340 = vsel %vm328, %v335, %v339
      %v342 = vsel %vm259, %v340, 0
      %v345 = vsel %vm263, %v319, 0
      %347 = vmatprep.subr.bf16.mxu0 0
      %348 = vmatpush1.bf16.msra.mxu0 %v345
      %349 = vmatprep.subr.bf16.mxu0 0
      %350 = vmatpush1.bf16.msra.mxu0 0
      %351 = vmatprep.subr.bf16.mxu0 0
      %352 = vmatpush1.bf16.msra.mxu0 0
      %353 = vmatprep.subr.bf16.mxu0 0
      %354 = vmatpush1.bf16.msra.mxu0 0
      %355 = vmatprep.subr.bf16.mxu0 0
      %356 = vmatpush1.bf16.msra.mxu0 0
      %357 = vmatprep.subr.bf16.mxu0 0
      %358 = vmatpush1.bf16.msra.mxu0 0
      %359 = vmatprep.subr.bf16.mxu0 0
      %360 = vmatpush1.bf16.msra.mxu0 0
      %361 = vmatprep.subr.bf16.mxu0 0
      %362 = vmatpush1.bf16.msra.mxu0 0
      %363 = vmatprep.subr.bf16.mxu0 0
      %364 = vmatpush1.bf16.msra.mxu0 0
      %365 = vmatprep.subr.bf16.mxu0 0
      %366 = vmatpush1.bf16.msra.mxu0 0
      %367 = vmatprep.subr.bf16.mxu0 0
      %368 = vmatpush1.bf16.msra.mxu0 0
      %369 = vmatprep.subr.bf16.mxu0 0
      %370 = vmatpush1.bf16.msra.mxu0 0
      %371 = vmatprep.subr.bf16.mxu0 0
      %372 = vmatpush1.bf16.msra.mxu0 0
      %373 = vmatprep.subr.bf16.mxu0 0
      %374 = vmatpush1.bf16.msra.mxu0 0
      %375 = vmatprep.subr.bf16.mxu0 0
      %376 = vmatpush1.bf16.msra.mxu0 0
      %377 = vmatprep.subr.bf16.mxu0 0
      %378 = vmatpush1.bf16.msra.mxu0 0
      %379 = vmatprep.mubr.bf16.mxu0 0
      %380 = vmatmul.mubr.bf16.gmra.mrb[0].mxu0 %v342
      %v381 = vpop.f32.mrb[0].mxu0
      %v382 = vadd.f32 0.0, %v381
      %v383 = vpop.f32.mrb[0].mxu0
      %v384 = vpop.f32.mrb[0].mxu0
      %v385 = vadd.f32 0.0, %v384
      %v386 = vpop.f32.mrb[0].mxu0
      %387 = vdwg.mxu0
      %v388 = vadd.f32 %v316, %v382
      %v389 = vadd.f32 %v317, %v385
      %390 = vst.msk [vmem:[#allocation2] sm:$0xff] %vm310, %v388
      %391 = vst.msk [vmem:[#allocation2 + $0x8] sm:$0xff] %vm310, %v389
      %v392 = vld [vmem:[%s225] sm:$0xe]
      %v393 = vld [vmem:[%s225 + $0x4] sm:$0xf]
      %v394 = vld [vmem:[%s225 + $0x8] sm:$0x1]
      %v395 = vld [vmem:[#allocation2] sm:$0xff]
      %v396 = vld [vmem:[#allocation2 + $0x8] sm:$0xff]
      %s397 = scalar_lea.vmem %s231, 4
      %v398 = vld [vmem:[%s397] sm:$0x3]
      %v402 = vunpack.c.l.b16 %v392
      %v403 = vunpack.c.l.b16 %v393
      %v404 = vunpack.c.l.b16 %v394
      %v405 = vpack.c.b16 %v403, %v402
      %v406 = vpack.c.b16 %v404, %v404
      %vm407 = vcmask 1046528
      %v408 = vrot.slane %v405, 1
      %v409 = vrot.slane %v406, 1
      %v410 = vsel %vm407, %v408, %v409
      %v412 = vsel %vm259, %v410, 0
      %v415 = vsel %vm263, %v398, 0
      %417 = vmatprep.subr.bf16.mxu0 0
      %418 = vmatpush1.bf16.msra.mxu0 %v415
      %419 = vmatprep.subr.bf16.mxu0 0
      %420 = vmatpush1.bf16.msra.mxu0 0
      %421 = vmatprep.subr.bf16.mxu0 0
      %422 = vmatpush1.bf16.msra.mxu0 0
      %423 = vmatprep.subr.bf16.mxu0 0
      %424 = vmatpush1.bf16.msra.mxu0 0
      %425 = vmatprep.subr.bf16.mxu0 0
      %426 = vmatpush1.bf16.msra.mxu0 0
      %427 = vmatprep.subr.bf16.mxu0 0
      %428 = vmatpush1.bf16.msra.mxu0 0
      %429 = vmatprep.subr.bf16.mxu0 0
      %430 = vmatpush1.bf16.msra.mxu0 0
      %431 = vmatprep.subr.bf16.mxu0 0
      %432 = vmatpush1.bf16.msra.mxu0 0
      %433 = vmatprep.subr.bf16.mxu0 0
      %434 = vmatpush1.bf16.msra.mxu0 0
      %435 = vmatprep.subr.bf16.mxu0 0
      %436 = vmatpush1.bf16.msra.mxu0 0
      %437 = vmatprep.subr.bf16.mxu0 0
      %438 = vmatpush1.bf16.msra.mxu0 0
      %439 = vmatprep.subr.bf16.mxu0 0
      %440 = vmatpush1.bf16.msra.mxu0 0
      %441 = vmatprep.subr.bf16.mxu0 0
      %442 = vmatpush1.bf16.msra.mxu0 0
      %443 = vmatprep.subr.bf16.mxu0 0
      %444 = vmatpush1.bf16.msra.mxu0 0
      %445 = vmatprep.subr.bf16.mxu0 0
      %446 = vmatpush1.bf16.msra.mxu0 0
      %447 = vmatprep.subr.bf16.mxu0 0
      %448 = vmatpush1.bf16.msra.mxu0 0
      %449 = vmatprep.mubr.bf16.mxu0 0
      %450 = vmatmul.mubr.bf16.gmra.mrb[0].mxu0 %v412
      %v451 = vpop.f32.mrb[0].mxu0
      %v452 = vadd.f32 0.0, %v451
      %v453 = vpop.f32.mrb[0].mxu0
      %v454 = vpop.f32.mrb[0].mxu0
      %v455 = vadd.f32 0.0, %v454
      %v456 = vpop.f32.mrb[0].mxu0
      %457 = vdwg.mxu0
      %v458 = vadd.f32 %v395, %v452
      %v459 = vadd.f32 %v396, %v455
      %460 = vst.msk [vmem:[#allocation2] sm:$0xff] %vm310, %v458
      %461 = vst.msk [vmem:[#allocation2 + $0x8] sm:$0xff] %vm310, %v459
      %p462 = scmp.eq.s32.totalorder %s21, 2
      // Predicated region
      $region37: #{sequential_nchw.6} parent=31 // pred_check
        %p463 = pneg %p462
      $region38: #{sequential_nchw.6} parent=31 // pred_check_branch
        %465 = sbr.rel (%p463) target = $region40
      $region39: #{sequential_nchw.6} parent=31 // pred_region
        %v466 = vld [vmem:[#allocation2] sm:$0xff]
        %v467 = vld [vmem:[#allocation2 + $0x8] sm:$0xff]
        %v468 = vld [vmem:[%s2] sm:$0x1]
        %v470 = vlaneseq
        %v471 = vshrl.u32 %v470, 7
        %v472 = vsub.s32 0, %v471
        %v473 = vrot.slane %v468, %v472
        %v475 = vadd.f32 %v466, %v473
        %v476 = vadd.f32 %v467, %v473
        %477 = vst.msk [vmem:[%s240] sm:$0xff] %vm310, %v475
        %478 = vst.msk [vmem:[%s240 + $0x8] sm:$0xff] %vm310, %v476
      $region40: #{sequential_nchw.6} parent=31 // pred_fallthru
        _
      %p479 = scmp.lt.s32.totalorder %s19, 1
      %s480 = scalar_select %p479, %s19, 1
      %p481 = scmp.lt.s32.totalorder %s20, 15
      %s482 = scalar_select %p481, %s20, 15
      %s483 = smul.addr %s482, 2
      %s484 = smul.addr %s480, 32
      %s485 = sadd.s32 %s483, %s484
      %s486 = smul.addr %s485, 8
      %s487 = scalar_lea.vmem %s3, %s486
      // Predicated region
      $region41: #{sequential_nchw.6} parent=31 // pred_check
        %p488 = pneg %p130
      $region42: #{sequential_nchw.6} parent=31 // pred_check_branch
        %490 = sbr.rel (%p488) target = $region44
      $region43: #{sequential_nchw.6} parent=31 // pred_region
        _
      $region44: #{sequential_nchw.6} parent=31 // pred_fallthru
        _
    $region32: #{sequential_nchw.6} parent=5 // pred_fallthru
      _
    %p491 = scmp.le.s32.totalorder 2, %s9
    // Predicated region
    $region45: #{sequential_nchw.6} parent=5 // pred_check
      %p492 = pneg %p491
    $region46: #{sequential_nchw.6} parent=5 // pred_check_branch
      %494 = sbr.rel (%p492) target = $region48
    $region47: #{sequential_nchw.6} parent=5 // pred_region
      %s495 = ssub.s32 %s9, 2
      // Predicated region
      $region49: #{sequential_nchw.6} parent=47 // pred_check
        %p496 = pneg %p136
      $region50: #{sequential_nchw.6} parent=47 // pred_check_branch
        %498 = sbr.rel (%p496) target = $region52
      $region51: #{sequential_nchw.6} parent=47 // pred_region
        %p499 = scmp.lt.s32.totalorder %s22, 1
        %s500 = scalar_select %p499, %s22, 1
        %p501 = scmp.lt.s32.totalorder %s23, 15
        %s502 = scalar_select %p501, %s23, 15
        %s503 = smul.addr %s502, 2
        %s504 = smul.addr %s500, 32
        %s505 = sadd.s32 %s503, %s504
        %s506 = smul.addr %s505, 8
        %s507 = scalar_lea.vmem %s3, %s506
      $region52: #{sequential_nchw.6} parent=47 // pred_fallthru
        _
    $region48: #{sequential_nchw.6} parent=5 // pred_fallthru
      _
  $region6: #{sequential_nchw.6} parent=0 // loop_footer
    %s13 = sadd.s32 1, %s9
  $region7: #{sequential_nchw.6} parent=0 // loop_footer_branch
    %8 = sbr.rel target = $region3
  $region8: #{sequential_nchw.6} parent=0 // loop_exit
    _

// kernel: sequential_nchw.7
$region0: #{sequential_nchw.7}
  #allocation0 [shape = 'u32[]', space=smem, size = 0x4, offset = 0x4, fixed_abs, tag = 'smem constant byte address 0x4 - core index']
  #allocation1 [shape = 'u32[144,128]{1,0:T(1,128)}', space=vmem, size = 0x12000, scoped, tag = 'internal scratch']
  %s0 = inlined_call_operand.vmem [shape: f32[512,32], index: 0, kind: input, shape index: {}]
  %s1 = inlined_call_operand.vmem [shape: f32[1,32], index: 1, kind: input, shape index: {}]
  %s2 = inlined_call_operand.vmem [shape: f32[1,32], index: 2, kind: input, shape index: {}]
  %s3 = inlined_call_operand.vmem [shape: f32[512,32], index: 3, kind: output, shape index: {}]
  %s4 = sld [smem:[#allocation0]]
  $region22: #{sequential_nchw.7} parent=0
    _
  %s6 = ssub.s32 1, %s4
  %s7 = scalar_select 0, %s6, %s4
  // Predicated region
  $region2: #{sequential_nchw.7} parent=0 // pred_check
    _
  $region3: #{sequential_nchw.7} parent=0 // pred_check_branch
    %9 = sbr.rel (0) target = $region5
  $region4: #{sequential_nchw.7} parent=0 // pred_region
    _
  $region5: #{sequential_nchw.7} parent=0 // pred_fallthru
    _
  // Predicated region
  $region6: #{sequential_nchw.7} parent=0 // pred_check
    _
  $region7: #{sequential_nchw.7} parent=0 // pred_check_branch
    %11 = sbr.rel (0) target = $region9
  $region8: #{sequential_nchw.7} parent=0 // pred_region
    _
  $region9: #{sequential_nchw.7} parent=0 // pred_fallthru
    _
  // Predicated region
  $region10: #{sequential_nchw.7} parent=0 // pred_check
    _
  $region11: #{sequential_nchw.7} parent=0 // pred_check_branch
    %13 = sbr.rel (0) target = $region13
  $region12: #{sequential_nchw.7} parent=0 // pred_region
    _
  $region13: #{sequential_nchw.7} parent=0 // pred_fallthru
    _
  %v14 = vld [vmem:[%s0] sm:$0xff]
  %v15 = vld [vmem:[%s0 + $0x8] sm:$0xff]
  %v16 = vld [vmem:[%s0 + $0x10] sm:$0xff]
  %v17 = vld [vmem:[%s0 + $0x18] sm:$0xff]
  %v18 = vld [vmem:[%s0 + $0x20] sm:$0xff]
  %v19 = vld [vmem:[%s0 + $0x28] sm:$0xff]
  %v20 = vld [vmem:[%s0 + $0x30] sm:$0xff]
  %v21 = vld [vmem:[%s0 + $0x38] sm:$0xff]
  %v22 = vld [vmem:[%s0 + $0x40] sm:$0xff]
  %v23 = vld [vmem:[%s0 + $0x48] sm:$0xff]
  %v24 = vld [vmem:[%s0 + $0x50] sm:$0xff]
  %v25 = vld [vmem:[%s0 + $0x58] sm:$0xff]
  %v26 = vld [vmem:[%s0 + $0x60] sm:$0xff]
  %v27 = vld [vmem:[%s0 + $0x68] sm:$0xff]
  %v28 = vld [vmem:[%s0 + $0x70] sm:$0xff]
  %v29 = vld [vmem:[%s0 + $0x78] sm:$0xff]
  %v30 = vld [vmem:[%s0 + $0x80] sm:$0xff]
  %v31 = vld [vmem:[%s0 + $0x88] sm:$0xff]
  %v32 = vld [vmem:[%s0 + $0x90] sm:$0xff]
  %v33 = vld [vmem:[%s0 + $0x98] sm:$0xff]
  %v34 = vld [vmem:[%s0 + $0xa0] sm:$0xff]
  %v35 = vld [vmem:[%s0 + $0xa8] sm:$0xff]
  %v36 = vld [vmem:[%s0 + $0xb0] sm:$0xff]
  %v37 = vld [vmem:[%s0 + $0xb8] sm:$0xff]
  %v38 = vld [vmem:[%s0 + $0xc0] sm:$0xff]
  %v39 = vld [vmem:[%s0 + $0xc8] sm:$0xff]
  %v40 = vld [vmem:[%s0 + $0xd0] sm:$0xff]
  %v41 = vld [vmem:[%s0 + $0xd8] sm:$0xff]
  %v42 = vld [vmem:[%s0 + $0xe0] sm:$0xff]
  %v43 = vld [vmem:[%s0 + $0xe8] sm:$0xff]
  %v44 = vld [vmem:[%s0 + $0xf0] sm:$0xff]
  %v45 = vld [vmem:[%s0 + $0xf8] sm:$0xff]
  %v46 = vld [vmem:[%s0 + $0x100] sm:$0xff]
  %v47 = vld [vmem:[%s0 + $0x108] sm:$0xff]
  %v48 = vld [vmem:[%s0 + $0x110] sm:$0xff]
  %v49 = vld [vmem:[%s0 + $0x118] sm:$0xff]
  %v50 = vld [vmem:[%s0 + $0x120] sm:$0xff]
  %v51 = vld [vmem:[%s0 + $0x128] sm:$0xff]
  %v52 = vld [vmem:[%s0 + $0x130] sm:$0xff]
  %v53 = vld [vmem:[%s0 + $0x138] sm:$0xff]
  %v54 = vld [vmem:[%s0 + $0x140] sm:$0xff]
  %v55 = vld [vmem:[%s0 + $0x148] sm:$0xff]
  %v56 = vld [vmem:[%s0 + $0x150] sm:$0xff]
  %v57 = vld [vmem:[%s0 + $0x158] sm:$0xff]
  %v58 = vld [vmem:[%s0 + $0x160] sm:$0xff]
  %v59 = vld [vmem:[%s0 + $0x168] sm:$0xff]
  %v60 = vld [vmem:[%s0 + $0x170] sm:$0xff]
  %v61 = vld [vmem:[%s0 + $0x178] sm:$0xff]
  %v62 = vld [vmem:[%s0 + $0x180] sm:$0xff]
  %v63 = vld [vmem:[%s0 + $0x188] sm:$0xff]
  %v64 = vld [vmem:[%s0 + $0x190] sm:$0xff]
  %v65 = vld [vmem:[%s0 + $0x198] sm:$0xff]
  %v66 = vld [vmem:[%s0 + $0x1a0] sm:$0xff]
  %v67 = vld [vmem:[%s0 + $0x1a8] sm:$0xff]
  %v68 = vld [vmem:[%s0 + $0x1b0] sm:$0xff]
  %v69 = vld [vmem:[%s0 + $0x1b8] sm:$0xff]
  %v70 = vld [vmem:[%s0 + $0x1c0] sm:$0xff]
  %v71 = vld [vmem:[%s0 + $0x1c8] sm:$0xff]
  %v72 = vld [vmem:[%s0 + $0x1d0] sm:$0xff]
  %v73 = vld [vmem:[%s0 + $0x1d8] sm:$0xff]
  %v74 = vld [vmem:[%s0 + $0x1e0] sm:$0xff]
  %v75 = vld [vmem:[%s0 + $0x1e8] sm:$0xff]
  %v76 = vld [vmem:[%s0 + $0x1f0] sm:$0xff]
  %v77 = vld [vmem:[%s0 + $0x1f8] sm:$0xff]
  %v78 = vld [vmem:[%s1] sm:$0x1]
  %v80 = vlaneseq
  %v81 = vshrl.u32 %v80, 7
  %v82 = vsub.s32 0, %v81
  %v83 = vrot.slane %v78, %v82
  %v85 = vmul.f32 %v14, %v83
  %v86 = vmul.f32 %v15, %v83
  %v87 = vmul.f32 %v16, %v83
  %v88 = vmul.f32 %v17, %v83
  %v89 = vmul.f32 %v18, %v83
  %v90 = vmul.f32 %v19, %v83
  %v91 = vmul.f32 %v20, %v83
  %v92 = vmul.f32 %v21, %v83
  %v93 = vmul.f32 %v22, %v83
  %v94 = vmul.f32 %v23, %v83
  %v95 = vmul.f32 %v24, %v83
  %v96 = vmul.f32 %v25, %v83
  %v97 = vmul.f32 %v26, %v83
  %v98 = vmul.f32 %v27, %v83
  %v99 = vmul.f32 %v28, %v83
  %v100 = vmul.f32 %v29, %v83
  %v101 = vmul.f32 %v30, %v83
  %v102 = vmul.f32 %v31, %v83
  %v103 = vmul.f32 %v32, %v83
  %v104 = vmul.f32 %v33, %v83
  %v105 = vmul.f32 %v34, %v83
  %v106 = vmul.f32 %v35, %v83
  %v107 = vmul.f32 %v36, %v83
  %v108 = vmul.f32 %v37, %v83
  %v109 = vmul.f32 %v38, %v83
  %v110 = vmul.f32 %v39, %v83
  %v111 = vmul.f32 %v40, %v83
  %v112 = vmul.f32 %v41, %v83
  %v113 = vmul.f32 %v42, %v83
  %v114 = vmul.f32 %v43, %v83
  %v115 = vmul.f32 %v44, %v83
  %v116 = vmul.f32 %v45, %v83
  %v117 = vmul.f32 %v46, %v83
  %v118 = vmul.f32 %v47, %v83
  %v119 = vmul.f32 %v48, %v83
  %v120 = vmul.f32 %v49, %v83
  %v121 = vmul.f32 %v50, %v83
  %v122 = vmul.f32 %v51, %v83
  %v123 = vmul.f32 %v52, %v83
  %v124 = vmul.f32 %v53, %v83
  %v125 = vmul.f32 %v54, %v83
  %v126 = vmul.f32 %v55, %v83
  %v127 = vmul.f32 %v56, %v83
  %v128 = vmul.f32 %v57, %v83
  %v129 = vmul.f32 %v58, %v83
  %v130 = vmul.f32 %v59, %v83
  %v131 = vmul.f32 %v60, %v83
  %v132 = vmul.f32 %v61, %v83
  %v133 = vmul.f32 %v62, %v83
  %v134 = vmul.f32 %v63, %v83
  %v135 = vmul.f32 %v64, %v83
  %v136 = vmul.f32 %v65, %v83
  %v137 = vmul.f32 %v66, %v83
  %v138 = vmul.f32 %v67, %v83
  %v139 = vmul.f32 %v68, %v83
  %v140 = vmul.f32 %v69, %v83
  %v141 = vmul.f32 %v70, %v83
  %v142 = vmul.f32 %v71, %v83
  %v143 = vmul.f32 %v72, %v83
  %v144 = vmul.f32 %v73, %v83
  %v145 = vmul.f32 %v74, %v83
  %v146 = vmul.f32 %v75, %v83
  %v147 = vmul.f32 %v76, %v83
  %v148 = vmul.f32 %v77, %v83
  %v149 = vld [vmem:[%s2] sm:$0x1]
  %v151 = vlaneseq
  %v152 = vshrl.u32 %v151, 7
  %v153 = vsub.s32 0, %v152
  %v154 = vrot.slane %v149, %v153
  %v156 = vadd.f32 %v85, %v154
  %v157 = vadd.f32 %v86, %v154
  %v158 = vadd.f32 %v87, %v154
  %v159 = vadd.f32 %v88, %v154
  %v160 = vadd.f32 %v89, %v154
  %v161 = vadd.f32 %v90, %v154
  %v162 = vadd.f32 %v91, %v154
  %v163 = vadd.f32 %v92, %v154
  %v164 = vadd.f32 %v93, %v154
  %v165 = vadd.f32 %v94, %v154
  %v166 = vadd.f32 %v95, %v154
  %v167 = vadd.f32 %v96, %v154
  %v168 = vadd.f32 %v97, %v154
  %v169 = vadd.f32 %v98, %v154
  %v170 = vadd.f32 %v99, %v154
  %v171 = vadd.f32 %v100, %v154
  %v172 = vadd.f32 %v101, %v154
  %v173 = vadd.f32 %v102, %v154
  %v174 = vadd.f32 %v103, %v154
  %v175 = vadd.f32 %v104, %v154
  %v176 = vadd.f32 %v105, %v154
  %v177 = vadd.f32 %v106, %v154
  %v178 = vadd.f32 %v107, %v154
  %v179 = vadd.f32 %v108, %v154
  %v180 = vadd.f32 %v109, %v154
  %v181 = vadd.f32 %v110, %v154
  %v182 = vadd.f32 %v111, %v154
  %v183 = vadd.f32 %v112, %v154
  %v184 = vadd.f32 %v113, %v154
  %v185 = vadd.f32 %v114, %v154
  %v186 = vadd.f32 %v115, %v154
  %v187 = vadd.f32 %v116, %v154
  %v188 = vadd.f32 %v117, %v154
  %v189 = vadd.f32 %v118, %v154
  %v190 = vadd.f32 %v119, %v154
  %v191 = vadd.f32 %v120, %v154
  %v192 = vadd.f32 %v121, %v154
  %v193 = vadd.f32 %v122, %v154
  %v194 = vadd.f32 %v123, %v154
  %v195 = vadd.f32 %v124, %v154
  %v196 = vadd.f32 %v125, %v154
  %v197 = vadd.f32 %v126, %v154
  %v198 = vadd.f32 %v127, %v154
  %v199 = vadd.f32 %v128, %v154
  %v200 = vadd.f32 %v129, %v154
  %v201 = vadd.f32 %v130, %v154
  %v202 = vadd.f32 %v131, %v154
  %v203 = vadd.f32 %v132, %v154
  %v204 = vadd.f32 %v133, %v154
  %v205 = vadd.f32 %v134, %v154
  %v206 = vadd.f32 %v135, %v154
  %v207 = vadd.f32 %v136, %v154
  %v208 = vadd.f32 %v137, %v154
  %v209 = vadd.f32 %v138, %v154
  %v210 = vadd.f32 %v139, %v154
  %v211 = vadd.f32 %v140, %v154
  %v212 = vadd.f32 %v141, %v154
  %v213 = vadd.f32 %v142, %v154
  %v214 = vadd.f32 %v143, %v154
  %v215 = vadd.f32 %v144, %v154
  %v216 = vadd.f32 %v145, %v154
  %v217 = vadd.f32 %v146, %v154
  %v218 = vadd.f32 %v147, %v154
  %v219 = vadd.f32 %v148, %v154
  %v220 = vmul.f32 %v156, 0.1
  %v221 = vmul.f32 %v157, 0.1
  %v222 = vmul.f32 %v158, 0.1
  %v223 = vmul.f32 %v159, 0.1
  %v224 = vmul.f32 %v160, 0.1
  %v225 = vmul.f32 %v161, 0.1
  %v226 = vmul.f32 %v162, 0.1
  %v227 = vmul.f32 %v163, 0.1
  %v228 = vmul.f32 %v164, 0.1
  %v229 = vmul.f32 %v165, 0.1
  %v230 = vmul.f32 %v166, 0.1
  %v231 = vmul.f32 %v167, 0.1
  %v232 = vmul.f32 %v168, 0.1
  %v233 = vmul.f32 %v169, 0.1
  %v234 = vmul.f32 %v170, 0.1
  %v235 = vmul.f32 %v171, 0.1
  %v236 = vmul.f32 %v172, 0.1
  %v237 = vmul.f32 %v173, 0.1
  %v238 = vmul.f32 %v174, 0.1
  %v239 = vmul.f32 %v175, 0.1
  %v240 = vmul.f32 %v176, 0.1
  %v241 = vmul.f32 %v177, 0.1
  %v242 = vmul.f32 %v178, 0.1
  %v243 = vmul.f32 %v179, 0.1
  %v244 = vmul.f32 %v180, 0.1
  %v245 = vmul.f32 %v181, 0.1
  %v246 = vmul.f32 %v182, 0.1
  %v247 = vmul.f32 %v183, 0.1
  %v248 = vmul.f32 %v184, 0.1
  %v249 = vmul.f32 %v185, 0.1
  %v250 = vmul.f32 %v186, 0.1
  %v251 = vmul.f32 %v187, 0.1
  %v252 = vmul.f32 %v188, 0.1
  %v253 = vmul.f32 %v189, 0.1
  %v254 = vmul.f32 %v190, 0.1
  %v255 = vmul.f32 %v191, 0.1
  %v256 = vmul.f32 %v192, 0.1
  %v257 = vmul.f32 %v193, 0.1
  %v258 = vmul.f32 %v194, 0.1
  %v259 = vmul.f32 %v195, 0.1
  %v260 = vmul.f32 %v196, 0.1
  %v261 = vmul.f32 %v197, 0.1
  %v262 = vmul.f32 %v198, 0.1
  %v263 = vmul.f32 %v199, 0.1
  %v264 = vmul.f32 %v200, 0.1
  %v265 = vmul.f32 %v201, 0.1
  %v266 = vmul.f32 %v202, 0.1
  %v267 = vmul.f32 %v203, 0.1
  %v268 = vmul.f32 %v204, 0.1
  %v269 = vmul.f32 %v205, 0.1
  %v270 = vmul.f32 %v206, 0.1
  %v271 = vmul.f32 %v207, 0.1
  %v272 = vmul.f32 %v208, 0.1
  %v273 = vmul.f32 %v209, 0.1
  %v274 = vmul.f32 %v210, 0.1
  %v275 = vmul.f32 %v211, 0.1
  %v276 = vmul.f32 %v212, 0.1
  %v277 = vmul.f32 %v213, 0.1
  %v278 = vmul.f32 %v214, 0.1
  %v279 = vmul.f32 %v215, 0.1
  %v280 = vmul.f32 %v216, 0.1
  %v281 = vmul.f32 %v217, 0.1
  %v282 = vmul.f32 %v218, 0.1
  %v283 = vmul.f32 %v219, 0.1
  %v284 = vmax.f32 %v156, %v220
  %v285 = vmax.f32 %v157, %v221
  %v286 = vmax.f32 %v158, %v222
  %v287 = vmax.f32 %v159, %v223
  %v288 = vmax.f32 %v160, %v224
  %v289 = vmax.f32 %v161, %v225
  %v290 = vmax.f32 %v162, %v226
  %v291 = vmax.f32 %v163, %v227
  %v292 = vmax.f32 %v164, %v228
  %v293 = vmax.f32 %v165, %v229
  %v294 = vmax.f32 %v166, %v230
  %v295 = vmax.f32 %v167, %v231
  %v296 = vmax.f32 %v168, %v232
  %v297 = vmax.f32 %v169, %v233
  %v298 = vmax.f32 %v170, %v234
  %v299 = vmax.f32 %v171, %v235
  %v300 = vmax.f32 %v172, %v236
  %v301 = vmax.f32 %v173, %v237
  %v302 = vmax.f32 %v174, %v238
  %v303 = vmax.f32 %v175, %v239
  %v304 = vmax.f32 %v176, %v240
  %v305 = vmax.f32 %v177, %v241
  %v306 = vmax.f32 %v178, %v242
  %v307 = vmax.f32 %v179, %v243
  %v308 = vmax.f32 %v180, %v244
  %v309 = vmax.f32 %v181, %v245
  %v310 = vmax.f32 %v182, %v246
  %v311 = vmax.f32 %v183, %v247
  %v312 = vmax.f32 %v184, %v248
  %v313 = vmax.f32 %v185, %v249
  %v314 = vmax.f32 %v186, %v250
  %v315 = vmax.f32 %v187, %v251
  %v316 = vmax.f32 %v188, %v252
  %v317 = vmax.f32 %v189, %v253
  %v318 = vmax.f32 %v190, %v254
  %v319 = vmax.f32 %v191, %v255
  %v320 = vmax.f32 %v192, %v256
  %v321 = vmax.f32 %v193, %v257
  %v322 = vmax.f32 %v194, %v258
  %v323 = vmax.f32 %v195, %v259
  %v324 = vmax.f32 %v196, %v260
  %v325 = vmax.f32 %v197, %v261
  %v326 = vmax.f32 %v198, %v262
  %v327 = vmax.f32 %v199, %v263
  %v328 = vmax.f32 %v200, %v264
  %v329 = vmax.f32 %v201, %v265
  %v330 = vmax.f32 %v202, %v266
  %v331 = vmax.f32 %v203, %v267
  %v332 = vmax.f32 %v204, %v268
  %v333 = vmax.f32 %v205, %v269
  %v334 = vmax.f32 %v206, %v270
  %v335 = vmax.f32 %v207, %v271
  %v336 = vmax.f32 %v208, %v272
  %v337 = vmax.f32 %v209, %v273
  %v338 = vmax.f32 %v210, %v274
  %v339 = vmax.f32 %v211, %v275
  %v340 = vmax.f32 %v212, %v276
  %v341 = vmax.f32 %v213, %v277
  %v342 = vmax.f32 %v214, %v278
  %v343 = vmax.f32 %v215, %v279
  %v344 = vmax.f32 %v216, %v280
  %v345 = vmax.f32 %v217, %v281
  %v346 = vmax.f32 %v218, %v282
  %v347 = vmax.f32 %v219, %v283
  %vm348 = vcmask 261120
  %349 = vst.msk [vmem:[%s3] sm:$0xff] %vm348, %v284
  %350 = vst.msk [vmem:[%s3 + $0x8] sm:$0xff] %vm348, %v285
  %351 = vst.msk [vmem:[%s3 + $0x10] sm:$0xff] %vm348, %v286
  %352 = vst.msk [vmem:[%s3 + $0x18] sm:$0xff] %vm348, %v287
  %353 = vst.msk [vmem:[%s3 + $0x20] sm:$0xff] %vm348, %v288
  %354 = vst.msk [vmem:[%s3 + $0x28] sm:$0xff] %vm348, %v289
  %355 = vst.msk [vmem:[%s3 + $0x30] sm:$0xff] %vm348, %v290
  %356 = vst.msk [vmem:[%s3 + $0x38] sm:$0xff] %vm348, %v291
  %357 = vst.msk [vmem:[%s3 + $0x40] sm:$0xff] %vm348, %v292
  %358 = vst.msk [vmem:[%s3 + $0x48] sm:$0xff] %vm348, %v293
  %359 = vst.msk [vmem:[%s3 + $0x50] sm:$0xff] %vm348, %v294
  %360 = vst.msk [vmem:[%s3 + $0x58] sm:$0xff] %vm348, %v295
  %361 = vst.msk [vmem:[%s3 + $0x60] sm:$0xff] %vm348, %v296
  %362 = vst.msk [vmem:[%s3 + $0x68] sm:$0xff] %vm348, %v297
  %363 = vst.msk [vmem:[%s3 + $0x70] sm:$0xff] %vm348, %v298
  %364 = vst.msk [vmem:[%s3 + $0x78] sm:$0xff] %vm348, %v299
  %365 = vst.msk [vmem:[%s3 + $0x80] sm:$0xff] %vm348, %v300
  %366 = vst.msk [vmem:[%s3 + $0x88] sm:$0xff] %vm348, %v301
  %367 = vst.msk [vmem:[%s3 + $0x90] sm:$0xff] %vm348, %v302
  %368 = vst.msk [vmem:[%s3 + $0x98] sm:$0xff] %vm348, %v303
  %369 = vst.msk [vmem:[%s3 + $0xa0] sm:$0xff] %vm348, %v304
  %370 = vst.msk [vmem:[%s3 + $0xa8] sm:$0xff] %vm348, %v305
  %371 = vst.msk [vmem:[%s3 + $0xb0] sm:$0xff] %vm348, %v306
  %372 = vst.msk [vmem:[%s3 + $0xb8] sm:$0xff] %vm348, %v307
  %373 = vst.msk [vmem:[%s3 + $0xc0] sm:$0xff] %vm348, %v308
  %374 = vst.msk [vmem:[%s3 + $0xc8] sm:$0xff] %vm348, %v309
  %375 = vst.msk [vmem:[%s3 + $0xd0] sm:$0xff] %vm348, %v310
  %376 = vst.msk [vmem:[%s3 + $0xd8] sm:$0xff] %vm348, %v311
  %377 = vst.msk [vmem:[%s3 + $0xe0] sm:$0xff] %vm348, %v312
  %378 = vst.msk [vmem:[%s3 + $0xe8] sm:$0xff] %vm348, %v313
  %379 = vst.msk [vmem:[%s3 + $0xf0] sm:$0xff] %vm348, %v314
  %380 = vst.msk [vmem:[%s3 + $0xf8] sm:$0xff] %vm348, %v315
  %381 = vst.msk [vmem:[%s3 + $0x100] sm:$0xff] %vm348, %v316
  %382 = vst.msk [vmem:[%s3 + $0x108] sm:$0xff] %vm348, %v317
  %383 = vst.msk [vmem:[%s3 + $0x110] sm:$0xff] %vm348, %v318
  %384 = vst.msk [vmem:[%s3 + $0x118] sm:$0xff] %vm348, %v319
  %385 = vst.msk [vmem:[%s3 + $0x120] sm:$0xff] %vm348, %v320
  %386 = vst.msk [vmem:[%s3 + $0x128] sm:$0xff] %vm348, %v321
  %387 = vst.msk [vmem:[%s3 + $0x130] sm:$0xff] %vm348, %v322
  %388 = vst.msk [vmem:[%s3 + $0x138] sm:$0xff] %vm348, %v323
  %389 = vst.msk [vmem:[%s3 + $0x140] sm:$0xff] %vm348, %v324
  %390 = vst.msk [vmem:[%s3 + $0x148] sm:$0xff] %vm348, %v325
  %391 = vst.msk [vmem:[%s3 + $0x150] sm:$0xff] %vm348, %v326
  %392 = vst.msk [vmem:[%s3 + $0x158] sm:$0xff] %vm348, %v327
  %393 = vst.msk [vmem:[%s3 + $0x160] sm:$0xff] %vm348, %v328
  %394 = vst.msk [vmem:[%s3 + $0x168] sm:$0xff] %vm348, %v329
  %395 = vst.msk [vmem:[%s3 + $0x170] sm:$0xff] %vm348, %v330
  %396 = vst.msk [vmem:[%s3 + $0x178] sm:$0xff] %vm348, %v331
  %397 = vst.msk [vmem:[%s3 + $0x180] sm:$0xff] %vm348, %v332
  %398 = vst.msk [vmem:[%s3 + $0x188] sm:$0xff] %vm348, %v333
  %399 = vst.msk [vmem:[%s3 + $0x190] sm:$0xff] %vm348, %v334
  %400 = vst.msk [vmem:[%s3 + $0x198] sm:$0xff] %vm348, %v335
  %401 = vst.msk [vmem:[%s3 + $0x1a0] sm:$0xff] %vm348, %v336
  %402 = vst.msk [vmem:[%s3 + $0x1a8] sm:$0xff] %vm348, %v337
  %403 = vst.msk [vmem:[%s3 + $0x1b0] sm:$0xff] %vm348, %v338
  %404 = vst.msk [vmem:[%s3 + $0x1b8] sm:$0xff] %vm348, %v339
  %405 = vst.msk [vmem:[%s3 + $0x1c0] sm:$0xff] %vm348, %v340
  %406 = vst.msk [vmem:[%s3 + $0x1c8] sm:$0xff] %vm348, %v341
  %407 = vst.msk [vmem:[%s3 + $0x1d0] sm:$0xff] %vm348, %v342
  %408 = vst.msk [vmem:[%s3 + $0x1d8] sm:$0xff] %vm348, %v343
  %409 = vst.msk [vmem:[%s3 + $0x1e0] sm:$0xff] %vm348, %v344
  %410 = vst.msk [vmem:[%s3 + $0x1e8] sm:$0xff] %vm348, %v345
  %411 = vst.msk [vmem:[%s3 + $0x1f0] sm:$0xff] %vm348, %v346
  %412 = vst.msk [vmem:[%s3 + $0x1f8] sm:$0xff] %vm348, %v347
  // Predicated region
  $region14: #{sequential_nchw.7} parent=0 // pred_check
    _
  $region15: #{sequential_nchw.7} parent=0 // pred_check_branch
    %414 = sbr.rel (0) target = $region17
  $region16: #{sequential_nchw.7} parent=0 // pred_region
    _
  $region17: #{sequential_nchw.7} parent=0 // pred_fallthru
    _
  // Predicated region
  $region18: #{sequential_nchw.7} parent=0 // pred_check
    _
  $region19: #{sequential_nchw.7} parent=0 // pred_check_branch
    %416 = sbr.rel (0) target = $region21
  $region20: #{sequential_nchw.7} parent=0 // pred_region
    _
  $region21: #{sequential_nchw.7} parent=0 // pred_fallthru
    _

// kernel: sequential_nchw.8
$region0: #{sequential_nchw.8}
  #allocation0 [shape = 'u32[]', space=smem, size = 0x4, offset = 0x4, fixed_abs, tag = 'smem constant byte address 0x4 - core index']
  #allocation1 [shape = 'u32[144,128]{1,0:T(1,128)}', space=vmem, size = 0x12000, scoped, tag = 'internal scratch']
  #allocation2 [shape = 'f32[8,64]{1,0:T(8,128)}', space=vmem, size = 0x1000, scoped, tag = 'scratch operand']
  %s0 = inlined_call_operand.vmem [shape: bf16[2,18,9,64], index: 0, kind: input, shape index: {}]
  %s1 = inlined_call_operand.vmem [shape: bf16[3,3,32,64], index: 1, kind: input, shape index: {}]
  %s2 = inlined_call_operand.vmem [shape: f32[1,64], index: 2, kind: input, shape index: {}]
  %s3 = inlined_call_operand.vmem [shape: f32[2,8,8,64], index: 3, kind: output, shape index: {}]
  %s4 = sld [smem:[#allocation0]]
  $region53: #{sequential_nchw.8} parent=0
    _
  %s6 = ssub.s32 1, %s4
  %s7 = scalar_select 0, %s6, %s4
  loop: start=0, step=1, limit=50
  $region2: #{sequential_nchw.8} parent=0 // loop_pre_header
    _
  $region3: #{sequential_nchw.8} parent=0 // loop_header
    %s9 = sphi 0, %s13
    %p10 = scmp.ge.s32.totalorder %s9, 50
    %s16 = sphi 0, %s35
    %s17 = sphi 0, %s31
    %s18 = sphi 0, %s27
    %s19 = sphi 0, %s16
    %s20 = sphi 0, %s17
    %s21 = sphi 0, %s18
    %s22 = sphi 0, %s19
    %s23 = sphi 0, %s20
    %s24 = sphi 0, %s21
    %s44 = sphi 0, %s46
    %s47 = sphi 0, %s44
    %s48 = sphi 0, %s47
    %s64 = sphi 0, %s48
    %s70 = sphi 0, %s72
    %s73 = sphi 0, %s70
    %s74 = sphi 0, %s73
    %s90 = sphi 0, %s74
    %s94 = sphi 0, %s94
    %s96 = sphi 0, %s94
    %s97 = sphi 0, %s96
    %s111 = sphi 0, %s97
    %s119 = sphi 0, %s121
    %s122 = sphi 0, %s119
    %s123 = sphi 0, %s122
    %s139 = sphi 0, %s123
  $region4: #{sequential_nchw.8} parent=0 // loop_header_branch
    %12 = sbr.rel (%p10) target = $region8
  $region5: #{sequential_nchw.8} parent=0 // loop_body
    %s14 = ssub.s32 %s9, 1
    %s15 = ssub.s32 %s9, 2
    %s25 = sadd.s32 1, %s18
    %p26 = scmp.ge.s32.totalorder %s25, 3
    %s27 = scalar_select %p26, 0, %s25
    %s28 = sadd.s32 1, %s17
    %s29 = scalar_select %p26, %s28, %s17
    %p30 = scmp.ge.s32.totalorder %s29, 8
    %s31 = scalar_select %p30, 0, %s29
    %s32 = sadd.s32 1, %s16
    %s33 = scalar_select %p30, %s32, %s16
    %p34 = scmp.ge.s32.totalorder %s33, 2
    %s35 = scalar_select %p34, 0, %s33
    %s36 = smul.u32 %s17, 2
    %s37 = sadd.s32 %s36, %s18
    %s38 = smul.u32 %s31, 2
    %s39 = sadd.s32 %s38, %s27
    %s40 = ssub.s32 %s16, %s35
    %s41 = ssub.s32 %s37, %s39
    %s42 = sor.u32 %s40, %s41
    %p43 = scmp.eq.s32.totalorder %s42, 0
    %s45 = sadd.s32 %s44, 1
    %s46 = scalar_select %p43, %s44, %s45
    %p49 = pneg %p43
    %p50 = scmp.eq.s32.totalorder %s9, 47
    %p51 = por %p49, %p50
    %p52 = scmp.ne.s32.totalorder %s44, %s47
    %p53 = scmp.eq.s32.totalorder %s9, 0
    %p54 = por %p52, %p53
    %p55 = scmp.ne.s32.totalorder %s44, %s47
    %p56 = scmp.eq.s32.totalorder %s14, 47
    %p57 = por %p55, %p56
    %p58 = scmp.ne.s32.totalorder %s47, %s48
    %p59 = scmp.eq.s32.totalorder %s14, 0
    %p60 = por %p58, %p59
    %p61 = scmp.ne.s32.totalorder %s47, %s48
    %p62 = scmp.eq.s32.totalorder %s15, 47
    %p63 = por %p61, %p62
    %p65 = scmp.ne.s32.totalorder %s48, %s64
    %p66 = scmp.eq.s32.totalorder %s15, 0
    %p67 = por %p65, %p66
    %s68 = ssub.s32 %s18, %s27
    %p69 = scmp.eq.s32.totalorder %s68, 0
    %s71 = sadd.s32 %s70, 1
    %s72 = scalar_select %p69, %s70, %s71
    %p75 = pneg %p69
    %p76 = scmp.eq.s32.totalorder %s9, 47
    %p77 = por %p75, %p76
    %p78 = scmp.ne.s32.totalorder %s70, %s73
    %p79 = scmp.eq.s32.totalorder %s9, 0
    %p80 = por %p78, %p79
    %p81 = scmp.ne.s32.totalorder %s70, %s73
    %p82 = scmp.eq.s32.totalorder %s14, 47
    %p83 = por %p81, %p82
    %p84 = scmp.ne.s32.totalorder %s73, %s74
    %p85 = scmp.eq.s32.totalorder %s14, 0
    %p86 = por %p84, %p85
    %p87 = scmp.ne.s32.totalorder %s73, %s74
    %p88 = scmp.eq.s32.totalorder %s15, 47
    %p89 = por %p87, %p88
    %p91 = scmp.ne.s32.totalorder %s74, %s90
    %p92 = scmp.eq.s32.totalorder %s15, 0
    %p93 = por %p91, %p92
    %s95 = sadd.s32 %s94, 1
    %p98 = scmp.eq.s32.totalorder %s9, 47
    %p99 = scmp.ne.s32.totalorder %s94, %s96
    %p100 = scmp.eq.s32.totalorder %s9, 0
    %p101 = por %p99, %p100
    %p102 = scmp.ne.s32.totalorder %s94, %s96
    %p103 = scmp.eq.s32.totalorder %s14, 47
    %p104 = por %p102, %p103
    %p105 = scmp.ne.s32.totalorder %s96, %s97
    %p106 = scmp.eq.s32.totalorder %s14, 0
    %p107 = por %p105, %p106
    %p108 = scmp.ne.s32.totalorder %s96, %s97
    %p109 = scmp.eq.s32.totalorder %s15, 47
    %p110 = por %p108, %p109
    %p112 = scmp.ne.s32.totalorder %s97, %s111
    %p113 = scmp.eq.s32.totalorder %s15, 0
    %p114 = por %p112, %p113
    %s115 = ssub.s32 %s16, %s35
    %s116 = ssub.s32 %s17, %s31
    %s117 = sor.u32 %s115, %s116
    %p118 = scmp.eq.s32.totalorder %s117, 0
    %s120 = sadd.s32 %s119, 1
    %s121 = scalar_select %p118, %s119, %s120
    %p124 = pneg %p118
    %p125 = scmp.eq.s32.totalorder %s9, 47
    %p126 = por %p124, %p125
    %p127 = scmp.ne.s32.totalorder %s119, %s122
    %p128 = scmp.eq.s32.totalorder %s9, 0
    %p129 = por %p127, %p128
    %p130 = scmp.ne.s32.totalorder %s119, %s122
    %p131 = scmp.eq.s32.totalorder %s14, 47
    %p132 = por %p130, %p131
    %p133 = scmp.ne.s32.totalorder %s122, %s123
    %p134 = scmp.eq.s32.totalorder %s14, 0
    %p135 = por %p133, %p134
    %p136 = scmp.ne.s32.totalorder %s122, %s123
    %p137 = scmp.eq.s32.totalorder %s15, 47
    %p138 = por %p136, %p137
    %p140 = scmp.ne.s32.totalorder %s123, %s139
    %p141 = scmp.eq.s32.totalorder %s15, 0
    %p142 = por %p140, %p141
    %p143 = scmp.le.s32.totalorder 1, %s9
    %p144 = scmp.lt.s32.totalorder %s9, 49
    %p145 = pnand %p143, %p144
    %p146 = pneg %p145
    // Predicated region
    $region9: #{sequential_nchw.8} parent=5 // pred_check
      _
    $region10: #{sequential_nchw.8} parent=5 // pred_check_branch
      %148 = sbr.rel (%p145) target = $region12
    $region11: #{sequential_nchw.8} parent=5 // pred_region
      %s149 = ssub.s32 %s9, 1
      // Predicated region
      $region13: #{sequential_nchw.8} parent=11 // pred_check
        %p150 = pneg %p107
      $region14: #{sequential_nchw.8} parent=11 // pred_check_branch
        %152 = sbr.rel (%p150) target = $region16
      $region15: #{sequential_nchw.8} parent=11 // pred_region
        _
      $region16: #{sequential_nchw.8} parent=11 // pred_fallthru
        _
    $region12: #{sequential_nchw.8} parent=5 // pred_fallthru
      _
    %p153 = scmp.lt.s32.totalorder %s9, 48
    // Predicated region
    $region17: #{sequential_nchw.8} parent=5 // pred_check
      %p154 = pneg %p153
    $region18: #{sequential_nchw.8} parent=5 // pred_check_branch
      %156 = sbr.rel (%p154) target = $region20
    $region19: #{sequential_nchw.8} parent=5 // pred_region
      // Predicated region
      $region21: #{sequential_nchw.8} parent=19 // pred_check
        %p157 = pneg %p54
      $region22: #{sequential_nchw.8} parent=19 // pred_check_branch
        %159 = sbr.rel (%p157) target = $region24
      $region23: #{sequential_nchw.8} parent=19 // pred_region
        %s160 = smul.u32 %s17, 2
        %s161 = sadd.s32 %s160, %s18
        %p162 = scmp.lt.s32.totalorder %s16, 1
        %s163 = scalar_select %p162, %s16, 1
        %p164 = scmp.lt.s32.totalorder %s161, 17
        %s165 = scalar_select %p164, %s161, 17
        %s166 = smul.addr %s165, 2
        %s167 = smul.addr %s163, 36
        %s168 = sadd.s32 %s166, %s167
        %s169 = smul.addr %s168, 4
        %s170 = scalar_lea.vmem %s0, %s169
        %s171 = smul.u32 %s17, 2
        %s172 = sadd.s32 %s171, %s18
      $region24: #{sequential_nchw.8} parent=19 // pred_fallthru
        _
      // Predicated region
      $region25: #{sequential_nchw.8} parent=19 // pred_check
        %p173 = pneg %p80
      $region26: #{sequential_nchw.8} parent=19 // pred_check_branch
        %175 = sbr.rel (%p173) target = $region28
      $region27: #{sequential_nchw.8} parent=19 // pred_region
        %p176 = scmp.lt.s32.totalorder %s18, 2
        %s177 = scalar_select %p176, %s18, 2
        %s178 = smul.addr %s177, 12
        %s179 = smul.addr %s178, 4
        %s180 = scalar_lea.vmem %s1, %s179
      $region28: #{sequential_nchw.8} parent=19 // pred_fallthru
        _
    $region20: #{sequential_nchw.8} parent=5 // pred_fallthru
      _
    %p181 = scmp.le.s32.totalorder 1, %s9
    %p182 = scmp.lt.s32.totalorder %s9, 49
    %p183 = pnand %p181, %p182
    %p184 = pneg %p183
    // Predicated region
    $region29: #{sequential_nchw.8} parent=5 // pred_check
      _
    $region30: #{sequential_nchw.8} parent=5 // pred_check_branch
      %186 = sbr.rel (%p183) target = $region32
    $region31: #{sequential_nchw.8} parent=5 // pred_region
      %s187 = ssub.s32 %s9, 1
      %s188 = smul.u32 %s20, 2
      %s189 = sadd.s32 %s188, %s21
      %p190 = scmp.lt.s32.totalorder %s19, 1
      %s191 = scalar_select %p190, %s19, 1
      %p192 = scmp.lt.s32.totalorder %s189, 17
      %s193 = scalar_select %p192, %s189, 17
      %s194 = smul.addr %s193, 2
      %s195 = smul.addr %s191, 36
      %s196 = sadd.s32 %s194, %s195
      %s197 = smul.addr %s196, 4
      %s198 = scalar_lea.vmem %s0, %s197
      %p199 = pneg %p60
      %p200 = pneg %p57
      %p201 = scmp.lt.s32.totalorder %s21, 2
      %s202 = scalar_select %p201, %s21, 2
      %s203 = smul.addr %s202, 12
      %s204 = smul.addr %s203, 4
      %s205 = scalar_lea.vmem %s1, %s204
      %p206 = pneg %p86
      %p207 = pneg %p83
      %p208 = pneg %p107
      %p209 = pneg %p104
      %p210 = pneg %p135
      %p211 = pneg %p132
      %p212 = scmp.lt.s32.totalorder %s19, 1
      %s213 = scalar_select %p212, %s19, 1
      %p214 = scmp.lt.s32.totalorder %s20, 7
      %s215 = scalar_select %p214, %s20, 7
      %s216 = smul.addr %s213, 8
      %s217 = sadd.s32 %s215, %s216
      %s218 = smul.addr %s217, 8
      %s219 = scalar_lea.vmem %s3, %s218
      %s220 = smul.u32 %s20, 2
      %s221 = sadd.s32 %s220, %s21
      %p222 = scmp.lt.s32.totalorder %s19, 1
      %s223 = scalar_select %p222, %s19, 1
      %p224 = scmp.lt.s32.totalorder %s221, 17
      %s225 = scalar_select %p224, %s221, 17
      %s226 = smul.addr %s225, 2
      %s227 = smul.addr %s223, 36
      %s228 = sadd.s32 %s226, %s227
      %s229 = smul.addr %s228, 4
      %s230 = scalar_lea.vmem %s0, %s229
      %s231 = smul.u32 %s20, 2
      %s232 = sadd.s32 %s231, %s21
      %p233 = scmp.lt.s32.totalorder %s21, 2
      %s234 = scalar_select %p233, %s21, 2
      %s235 = smul.addr %s234, 12
      %s236 = smul.addr %s235, 4
      %s237 = scalar_lea.vmem %s1, %s236
      %p238 = scmp.lt.s32.totalorder %s19, 1
      %s239 = scalar_select %p238, %s19, 1
      %p240 = scmp.lt.s32.totalorder %s20, 7
      %s241 = scalar_select %p240, %s20, 7
      %s242 = smul.addr %s239, 8
      %s243 = sadd.s32 %s241, %s242
      %s244 = smul.addr %s243, 8
      %s245 = scalar_lea.vmem %s3, %s244
      %p247 = scmp.eq.s32.totalorder %s21, 0
      // Predicated region
      $region33: #{sequential_nchw.8} parent=31 // pred_check
        %p248 = pneg %p247
      $region34: #{sequential_nchw.8} parent=31 // pred_check_branch
        %250 = sbr.rel (%p248) target = $region36
      $region35: #{sequential_nchw.8} parent=31 // pred_region
        %vm251 = vcmask 523264
        %252 = vst.msk [vmem:[#allocation2] sm:$0xff] %vm251, 0.0
      $region36: #{sequential_nchw.8} parent=31 // pred_fallthru
        _
      %v253 = vld [vmem:[%s230] sm:$0xf]
      %v254 = vld [vmem:[#allocation2] sm:$0xff]
      %v255 = vld [vmem:[%s237] sm:$0xf]
      %v256 = vld [vmem:[%s237 + $0x4] sm:$0xf]
      %v257 = vld [vmem:[%s237 + $0x8] sm:$0xf]
      %v258 = vld [vmem:[%s237 + $0xc] sm:$0xf]
      %v263 = vunpack.c.l.b16 %v255
      %v264 = vunpack.c.l.b16 %v256
      %v265 = vunpack.c.l.b16 %v257
      %v266 = vunpack.c.l.b16 %v258
      %v267 = vpack.c.b16 %v264, %v263
      %v268 = vpack.c.b16 %v266, %v265
      %vm271 = vcmask 261120
      %v273 = vsel %vm271, %v253, 0
      %275 = vmatprep.subr.bf16.mxu0 0
      %276 = vmatpush1.bf16.msra.mxu0 %v267
      %277 = vmatprep.subr.bf16.mxu0 0
      %278 = vmatpush1.bf16.msra.mxu0 %v268
      %279 = vmatprep.subr.bf16.mxu0 0
      %280 = vmatpush1.bf16.msra.mxu0 0
      %281 = vmatprep.subr.bf16.mxu0 0
      %282 = vmatpush1.bf16.msra.mxu0 0
      %283 = vmatprep.subr.bf16.mxu0 0
      %284 = vmatpush1.bf16.msra.mxu0 0
      %285 = vmatprep.subr.bf16.mxu0 0
      %286 = vmatpush1.bf16.msra.mxu0 0
      %287 = vmatprep.subr.bf16.mxu0 0
      %288 = vmatpush1.bf16.msra.mxu0 0
      %289 = vmatprep.subr.bf16.mxu0 0
      %290 = vmatpush1.bf16.msra.mxu0 0
      %291 = vmatprep.subr.bf16.mxu0 0
      %292 = vmatpush1.bf16.msra.mxu0 0
      %293 = vmatprep.subr.bf16.mxu0 0
      %294 = vmatpush1.bf16.msra.mxu0 0
      %295 = vmatprep.subr.bf16.mxu0 0
      %296 = vmatpush1.bf16.msra.mxu0 0
      %297 = vmatprep.subr.bf16.mxu0 0
      %298 = vmatpush1.bf16.msra.mxu0 0
      %299 = vmatprep.subr.bf16.mxu0 0
      %300 = vmatpush1.bf16.msra.mxu0 0
      %301 = vmatprep.subr.bf16.mxu0 0
      %302 = vmatpush1.bf16.msra.mxu0 0
      %303 = vmatprep.subr.bf16.mxu0 0
      %304 = vmatpush1.bf16.msra.mxu0 0
      %305 = vmatprep.subr.bf16.mxu0 0
      %306 = vmatpush1.bf16.msra.mxu0 0
      %307 = vmatprep.mubr.bf16.mxu0 0
      %308 = vmatmul.mubr.bf16.gmra.mrb[0].mxu0 %v273
      %v309 = vpop.f32.mrb[0].mxu0
      %v310 = vadd.f32 0.0, %v309
      %v311 = vpop.f32.mrb[0].mxu0
      %v312 = vpop.f32.mrb[0].mxu0
      %v313 = vpop.f32.mrb[0].mxu0
      %314 = vdwg.mxu0
      %v315 = vadd.f32 %v254, %v310
      %vm316 = vcmask 523264
      %317 = vst.msk [vmem:[#allocation2] sm:$0xff] %vm316, %v315
      %v318 = vld [vmem:[%s230] sm:$0xf]
      %v319 = vld [vmem:[#allocation2] sm:$0xff]
      %s320 = scalar_lea.vmem %s237, 16
      %v321 = vld [vmem:[%s320] sm:$0xf]
      %v322 = vld [vmem:[%s320 + $0x4] sm:$0xf]
      %v323 = vld [vmem:[%s320 + $0x8] sm:$0xf]
      %v324 = vld [vmem:[%s320 + $0xc] sm:$0xf]
      %v326 = vunpack.c.l.b16 %v318
      %v327 = vpack.c.b16 %v326, %v326
      %328 = vrot.lane.b32.xlu0 %v327, 96
      %v329 = vpop.permute.xlu0 %328
      %v334 = vunpack.c.l.b16 %v321
      %v335 = vunpack.c.l.b16 %v322
      %v336 = vunpack.c.l.b16 %v323
      %v337 = vunpack.c.l.b16 %v324
      %v338 = vpack.c.b16 %v335, %v334
      %v339 = vpack.c.b16 %v337, %v336
      %v343 = vsel %vm271, %v329, 0
      %345 = vmatprep.subr.bf16.mxu0 0
      %346 = vmatpush1.bf16.msra.mxu0 %v338
      %347 = vmatprep.subr.bf16.mxu0 0
      %348 = vmatpush1.bf16.msra.mxu0 %v339
      %349 = vmatprep.subr.bf16.mxu0 0
      %350 = vmatpush1.bf16.msra.mxu0 0
      %351 = vmatprep.subr.bf16.mxu0 0
      %352 = vmatpush1.bf16.msra.mxu0 0
      %353 = vmatprep.subr.bf16.mxu0 0
      %354 = vmatpush1.bf16.msra.mxu0 0
      %355 = vmatprep.subr.bf16.mxu0 0
      %356 = vmatpush1.bf16.msra.mxu0 0
      %357 = vmatprep.subr.bf16.mxu0 0
      %358 = vmatpush1.bf16.msra.mxu0 0
      %359 = vmatprep.subr.bf16.mxu0 0
      %360 = vmatpush1.bf16.msra.mxu0 0
      %361 = vmatprep.subr.bf16.mxu0 0
      %362 = vmatpush1.bf16.msra.mxu0 0
      %363 = vmatprep.subr.bf16.mxu0 0
      %364 = vmatpush1.bf16.msra.mxu0 0
      %365 = vmatprep.subr.bf16.mxu0 0
      %366 = vmatpush1.bf16.msra.mxu0 0
      %367 = vmatprep.subr.bf16.mxu0 0
      %368 = vmatpush1.bf16.msra.mxu0 0
      %369 = vmatprep.subr.bf16.mxu0 0
      %370 = vmatpush1.bf16.msra.mxu0 0
      %371 = vmatprep.subr.bf16.mxu0 0
      %372 = vmatpush1.bf16.msra.mxu0 0
      %373 = vmatprep.subr.bf16.mxu0 0
      %374 = vmatpush1.bf16.msra.mxu0 0
      %375 = vmatprep.subr.bf16.mxu0 0
      %376 = vmatpush1.bf16.msra.mxu0 0
      %377 = vmatprep.mubr.bf16.mxu0 0
      %378 = vmatmul.mubr.bf16.gmra.mrb[0].mxu0 %v343
      %v379 = vpop.f32.mrb[0].mxu0
      %v380 = vadd.f32 0.0, %v379
      %v381 = vpop.f32.mrb[0].mxu0
      %v382 = vpop.f32.mrb[0].mxu0
      %v383 = vpop.f32.mrb[0].mxu0
      %384 = vdwg.mxu0
      %v385 = vadd.f32 %v319, %v380
      %386 = vst.msk [vmem:[#allocation2] sm:$0xff] %vm316, %v385
      %v387 = vld [vmem:[%s230] sm:$0xf]
      %v388 = vld [vmem:[%s230 + $0x4] sm:$0x1]
      %v389 = vld [vmem:[#allocation2] sm:$0xff]
      %s390 = scalar_lea.vmem %s237, 32
      %v391 = vld [vmem:[%s390] sm:$0xf]
      %v392 = vld [vmem:[%s390 + $0x4] sm:$0xf]
      %v393 = vld [vmem:[%s390 + $0x8] sm:$0xf]
      %v394 = vld [vmem:[%s390 + $0xc] sm:$0xf]
      %v397 = vunpack.c.l.b16 %v387
      %v398 = vunpack.c.l.b16 %v388
      %v399 = vpack.c.b16 %v398, %v397
      %v401 = vshrl.u32 %v399, 16
      %v403 = vshll.u32 %v399, 16
      %v405 = vrot.slane %v403, 1
      %v406 = vor.u32 %v401, %v405
      %v411 = vunpack.c.l.b16 %v391
      %v412 = vunpack.c.l.b16 %v392
      %v413 = vunpack.c.l.b16 %v393
      %v414 = vunpack.c.l.b16 %v394
      %v415 = vpack.c.b16 %v412, %v411
      %v416 = vpack.c.b16 %v414, %v413
      %v420 = vsel %vm271, %v406, 0
      %422 = vmatprep.subr.bf16.mxu0 0
      %423 = vmatpush1.bf16.msra.mxu0 %v415
      %424 = vmatprep.subr.bf16.mxu0 0
      %425 = vmatpush1.bf16.msra.mxu0 %v416
      %426 = vmatprep.subr.bf16.mxu0 0
      %427 = vmatpush1.bf16.msra.mxu0 0
      %428 = vmatprep.subr.bf16.mxu0 0
      %429 = vmatpush1.bf16.msra.mxu0 0
      %430 = vmatprep.subr.bf16.mxu0 0
      %431 = vmatpush1.bf16.msra.mxu0 0
      %432 = vmatprep.subr.bf16.mxu0 0
      %433 = vmatpush1.bf16.msra.mxu0 0
      %434 = vmatprep.subr.bf16.mxu0 0
      %435 = vmatpush1.bf16.msra.mxu0 0
      %436 = vmatprep.subr.bf16.mxu0 0
      %437 = vmatpush1.bf16.msra.mxu0 0
      %438 = vmatprep.subr.bf16.mxu0 0
      %439 = vmatpush1.bf16.msra.mxu0 0
      %440 = vmatprep.subr.bf16.mxu0 0
      %441 = vmatpush1.bf16.msra.mxu0 0
      %442 = vmatprep.subr.bf16.mxu0 0
      %443 = vmatpush1.bf16.msra.mxu0 0
      %444 = vmatprep.subr.bf16.mxu0 0
      %445 = vmatpush1.bf16.msra.mxu0 0
      %446 = vmatprep.subr.bf16.mxu0 0
      %447 = vmatpush1.bf16.msra.mxu0 0
      %448 = vmatprep.subr.bf16.mxu0 0
      %449 = vmatpush1.bf16.msra.mxu0 0
      %450 = vmatprep.subr.bf16.mxu0 0
      %451 = vmatpush1.bf16.msra.mxu0 0
      %452 = vmatprep.subr.bf16.mxu0 0
      %453 = vmatpush1.bf16.msra.mxu0 0
      %454 = vmatprep.mubr.bf16.mxu0 0
      %455 = vmatmul.mubr.bf16.gmra.mrb[0].mxu0 %v420
      %v456 = vpop.f32.mrb[0].mxu0
      %v457 = vadd.f32 0.0, %v456
      %v458 = vpop.f32.mrb[0].mxu0
      %v459 = vpop.f32.mrb[0].mxu0
      %v460 = vpop.f32.mrb[0].mxu0
      %461 = vdwg.mxu0
      %v462 = vadd.f32 %v389, %v457
      %463 = vst.msk [vmem:[#allocation2] sm:$0xff] %vm316, %v462
      %p464 = scmp.eq.s32.totalorder %s21, 2
      // Predicated region
      $region37: #{sequential_nchw.8} parent=31 // pred_check
        %p465 = pneg %p464
      $region38: #{sequential_nchw.8} parent=31 // pred_check_branch
        %467 = sbr.rel (%p465) target = $region40
      $region39: #{sequential_nchw.8} parent=31 // pred_region
        %v468 = vld [vmem:[#allocation2] sm:$0xff]
        %v469 = vld [vmem:[%s2] sm:$0x1]
        %v471 = vlaneseq
        %v472 = vshrl.u32 %v471, 7
        %v473 = vsub.s32 0, %v472
        %v474 = vrot.slane %v469, %v473
        %v476 = vadd.f32 %v468, %v474
        %477 = vst.msk [vmem:[%s245] sm:$0xff] %vm316, %v476
      $region40: #{sequential_nchw.8} parent=31 // pred_fallthru
        _
      %p478 = scmp.lt.s32.totalorder %s19, 1
      %s479 = scalar_select %p478, %s19, 1
      %p480 = scmp.lt.s32.totalorder %s20, 7
      %s481 = scalar_select %p480, %s20, 7
      %s482 = smul.addr %s479, 8
      %s483 = sadd.s32 %s481, %s482
      %s484 = smul.addr %s483, 8
      %s485 = scalar_lea.vmem %s3, %s484
      // Predicated region
      $region41: #{sequential_nchw.8} parent=31 // pred_check
        %p486 = pneg %p132
      $region42: #{sequential_nchw.8} parent=31 // pred_check_branch
        %488 = sbr.rel (%p486) target = $region44
      $region43: #{sequential_nchw.8} parent=31 // pred_region
        _
      $region44: #{sequential_nchw.8} parent=31 // pred_fallthru
        _
    $region32: #{sequential_nchw.8} parent=5 // pred_fallthru
      _
    %p489 = scmp.le.s32.totalorder 2, %s9
    // Predicated region
    $region45: #{sequential_nchw.8} parent=5 // pred_check
      %p490 = pneg %p489
    $region46: #{sequential_nchw.8} parent=5 // pred_check_branch
      %492 = sbr.rel (%p490) target = $region48
    $region47: #{sequential_nchw.8} parent=5 // pred_region
      %s493 = ssub.s32 %s9, 2
      // Predicated region
      $region49: #{sequential_nchw.8} parent=47 // pred_check
        %p494 = pneg %p138
      $region50: #{sequential_nchw.8} parent=47 // pred_check_branch
        %496 = sbr.rel (%p494) target = $region52
      $region51: #{sequential_nchw.8} parent=47 // pred_region
        %p497 = scmp.lt.s32.totalorder %s22, 1
        %s498 = scalar_select %p497, %s22, 1
        %p499 = scmp.lt.s32.totalorder %s23, 7
        %s500 = scalar_select %p499, %s23, 7
        %s501 = smul.addr %s498, 8
        %s502 = sadd.s32 %s500, %s501
        %s503 = smul.addr %s502, 8
        %s504 = scalar_lea.vmem %s3, %s503
      $region52: #{sequential_nchw.8} parent=47 // pred_fallthru
        _
    $region48: #{sequential_nchw.8} parent=5 // pred_fallthru
      _
  $region6: #{sequential_nchw.8} parent=0 // loop_footer
    %s13 = sadd.s32 1, %s9
  $region7: #{sequential_nchw.8} parent=0 // loop_footer_branch
    %8 = sbr.rel target = $region3
  $region8: #{sequential_nchw.8} parent=0 // loop_exit
    _

// kernel: sequential_nchw.9
$region0: #{sequential_nchw.9}
  #allocation0 [shape = 'u32[]', space=smem, size = 0x4, offset = 0x4, fixed_abs, tag = 'smem constant byte address 0x4 - core index']
  #allocation1 [shape = 'u32[144,128]{1,0:T(1,128)}', space=vmem, size = 0x12000, scoped, tag = 'internal scratch']
  %s0 = inlined_call_operand.vmem [shape: f32[128,64], index: 0, kind: input, shape index: {}]
  %s1 = inlined_call_operand.vmem [shape: f32[1,64], index: 1, kind: input, shape index: {}]
  %s2 = inlined_call_operand.vmem [shape: f32[1,64], index: 2, kind: input, shape index: {}]
  %s3 = inlined_call_operand.vmem [shape: f32[128,64], index: 3, kind: output, shape index: {}]
  %s4 = sld [smem:[#allocation0]]
  $region22: #{sequential_nchw.9} parent=0
    _
  %s6 = ssub.s32 1, %s4
  %s7 = scalar_select 0, %s6, %s4
  // Predicated region
  $region2: #{sequential_nchw.9} parent=0 // pred_check
    _
  $region3: #{sequential_nchw.9} parent=0 // pred_check_branch
    %9 = sbr.rel (0) target = $region5
  $region4: #{sequential_nchw.9} parent=0 // pred_region
    _
  $region5: #{sequential_nchw.9} parent=0 // pred_fallthru
    _
  // Predicated region
  $region6: #{sequential_nchw.9} parent=0 // pred_check
    _
  $region7: #{sequential_nchw.9} parent=0 // pred_check_branch
    %11 = sbr.rel (0) target = $region9
  $region8: #{sequential_nchw.9} parent=0 // pred_region
    _
  $region9: #{sequential_nchw.9} parent=0 // pred_fallthru
    _
  // Predicated region
  $region10: #{sequential_nchw.9} parent=0 // pred_check
    _
  $region11: #{sequential_nchw.9} parent=0 // pred_check_branch
    %13 = sbr.rel (0) target = $region13
  $region12: #{sequential_nchw.9} parent=0 // pred_region
    _
  $region13: #{sequential_nchw.9} parent=0 // pred_fallthru
    _
  %v14 = vld [vmem:[%s0] sm:$0xff]
  %v15 = vld [vmem:[%s0 + $0x8] sm:$0xff]
  %v16 = vld [vmem:[%s0 + $0x10] sm:$0xff]
  %v17 = vld [vmem:[%s0 + $0x18] sm:$0xff]
  %v18 = vld [vmem:[%s0 + $0x20] sm:$0xff]
  %v19 = vld [vmem:[%s0 + $0x28] sm:$0xff]
  %v20 = vld [vmem:[%s0 + $0x30] sm:$0xff]
  %v21 = vld [vmem:[%s0 + $0x38] sm:$0xff]
  %v22 = vld [vmem:[%s0 + $0x40] sm:$0xff]
  %v23 = vld [vmem:[%s0 + $0x48] sm:$0xff]
  %v24 = vld [vmem:[%s0 + $0x50] sm:$0xff]
  %v25 = vld [vmem:[%s0 + $0x58] sm:$0xff]
  %v26 = vld [vmem:[%s0 + $0x60] sm:$0xff]
  %v27 = vld [vmem:[%s0 + $0x68] sm:$0xff]
  %v28 = vld [vmem:[%s0 + $0x70] sm:$0xff]
  %v29 = vld [vmem:[%s0 + $0x78] sm:$0xff]
  %v30 = vld [vmem:[%s1] sm:$0x1]
  %v32 = vlaneseq
  %v33 = vshrl.u32 %v32, 7
  %v34 = vsub.s32 0, %v33
  %v35 = vrot.slane %v30, %v34
  %v37 = vmul.f32 %v14, %v35
  %v38 = vmul.f32 %v15, %v35
  %v39 = vmul.f32 %v16, %v35
  %v40 = vmul.f32 %v17, %v35
  %v41 = vmul.f32 %v18, %v35
  %v42 = vmul.f32 %v19, %v35
  %v43 = vmul.f32 %v20, %v35
  %v44 = vmul.f32 %v21, %v35
  %v45 = vmul.f32 %v22, %v35
  %v46 = vmul.f32 %v23, %v35
  %v47 = vmul.f32 %v24, %v35
  %v48 = vmul.f32 %v25, %v35
  %v49 = vmul.f32 %v26, %v35
  %v50 = vmul.f32 %v27, %v35
  %v51 = vmul.f32 %v28, %v35
  %v52 = vmul.f32 %v29, %v35
  %v53 = vld [vmem:[%s2] sm:$0x1]
  %v55 = vlaneseq
  %v56 = vshrl.u32 %v55, 7
  %v57 = vsub.s32 0, %v56
  %v58 = vrot.slane %v53, %v57
  %v60 = vadd.f32 %v37, %v58
  %v61 = vadd.f32 %v38, %v58
  %v62 = vadd.f32 %v39, %v58
  %v63 = vadd.f32 %v40, %v58
  %v64 = vadd.f32 %v41, %v58
  %v65 = vadd.f32 %v42, %v58
  %v66 = vadd.f32 %v43, %v58
  %v67 = vadd.f32 %v44, %v58
  %v68 = vadd.f32 %v45, %v58
  %v69 = vadd.f32 %v46, %v58
  %v70 = vadd.f32 %v47, %v58
  %v71 = vadd.f32 %v48, %v58
  %v72 = vadd.f32 %v49, %v58
  %v73 = vadd.f32 %v50, %v58
  %v74 = vadd.f32 %v51, %v58
  %v75 = vadd.f32 %v52, %v58
  %v76 = vmul.f32 %v60, 0.1
  %v77 = vmul.f32 %v61, 0.1
  %v78 = vmul.f32 %v62, 0.1
  %v79 = vmul.f32 %v63, 0.1
  %v80 = vmul.f32 %v64, 0.1
  %v81 = vmul.f32 %v65, 0.1
  %v82 = vmul.f32 %v66, 0.1
  %v83 = vmul.f32 %v67, 0.1
  %v84 = vmul.f32 %v68, 0.1
  %v85 = vmul.f32 %v69, 0.1
  %v86 = vmul.f32 %v70, 0.1
  %v87 = vmul.f32 %v71, 0.1
  %v88 = vmul.f32 %v72, 0.1
  %v89 = vmul.f32 %v73, 0.1
  %v90 = vmul.f32 %v74, 0.1
  %v91 = vmul.f32 %v75, 0.1
  %v92 = vmax.f32 %v60, %v76
  %v93 = vmax.f32 %v61, %v77
  %v94 = vmax.f32 %v62, %v78
  %v95 = vmax.f32 %v63, %v79
  %v96 = vmax.f32 %v64, %v80
  %v97 = vmax.f32 %v65, %v81
  %v98 = vmax.f32 %v66, %v82
  %v99 = vmax.f32 %v67, %v83
  %v100 = vmax.f32 %v68, %v84
  %v101 = vmax.f32 %v69, %v85
  %v102 = vmax.f32 %v70, %v86
  %v103 = vmax.f32 %v71, %v87
  %v104 = vmax.f32 %v72, %v88
  %v105 = vmax.f32 %v73, %v89
  %v106 = vmax.f32 %v74, %v90
  %v107 = vmax.f32 %v75, %v91
  %vm108 = vcmask 523264
  %109 = vst.msk [vmem:[%s3] sm:$0xff] %vm108, %v92
  %110 = vst.msk [vmem:[%s3 + $0x8] sm:$0xff] %vm108, %v93
  %111 = vst.msk [vmem:[%s3 + $0x10] sm:$0xff] %vm108, %v94
  %112 = vst.msk [vmem:[%s3 + $0x18] sm:$0xff] %vm108, %v95
  %113 = vst.msk [vmem:[%s3 + $0x20] sm:$0xff] %vm108, %v96
  %114 = vst.msk [vmem:[%s3 + $0x28] sm:$0xff] %vm108, %v97
  %115 = vst.msk [vmem:[%s3 + $0x30] sm:$0xff] %vm108, %v98
  %116 = vst.msk [vmem:[%s3 + $0x38] sm:$0xff] %vm108, %v99
  %117 = vst.msk [vmem:[%s3 + $0x40] sm:$0xff] %vm108, %v100
  %118 = vst.msk [vmem:[%s3 + $0x48] sm:$0xff] %vm108, %v101
  %119 = vst.msk [vmem:[%s3 + $0x50] sm:$0xff] %vm108, %v102
  %120 = vst.msk [vmem:[%s3 + $0x58] sm:$0xff] %vm108, %v103
  %121 = vst.msk [vmem:[%s3 + $0x60] sm:$0xff] %vm108, %v104
  %122 = vst.msk [vmem:[%s3 + $0x68] sm:$0xff] %vm108, %v105
  %123 = vst.msk [vmem:[%s3 + $0x70] sm:$0xff] %vm108, %v106
  %124 = vst.msk [vmem:[%s3 + $0x78] sm:$0xff] %vm108, %v107
  // Predicated region
  $region14: #{sequential_nchw.9} parent=0 // pred_check
    _
  $region15: #{sequential_nchw.9} parent=0 // pred_check_branch
    %126 = sbr.rel (0) target = $region17
  $region16: #{sequential_nchw.9} parent=0 // pred_region
    _
  $region17: #{sequential_nchw.9} parent=0 // pred_fallthru
    _
  // Predicated region
  $region18: #{sequential_nchw.9} parent=0 // pred_check
    _
  $region19: #{sequential_nchw.9} parent=0 // pred_check_branch
    %128 = sbr.rel (0) target = $region21
  $region20: #{sequential_nchw.9} parent=0 // pred_region
    _
  $region21: #{sequential_nchw.9} parent=0 // pred_fallthru
    _

// kernel: sequential_nchw.10
$region0: #{sequential_nchw.10}
  #allocation0 [shape = 'u32[]', space=smem, size = 0x4, offset = 0x4, fixed_abs, tag = 'smem constant byte address 0x4 - core index']
  #allocation1 [shape = 'u32[144,128]{1,0:T(1,128)}', space=vmem, size = 0x12000, scoped, tag = 'internal scratch']
  #allocation2 [shape = 'f32[8,64]{1,0:T(8,128)}', space=vmem, size = 0x1000, scoped, tag = 'scratch operand']
  %s0 = inlined_call_operand.vmem [shape: bf16[2,8,8,64], index: 0, kind: input, shape index: {}]
  %s1 = inlined_call_operand.vmem [shape: bf16[1,1,64,64], index: 1, kind: input, shape index: {}]
  %s2 = inlined_call_operand.vmem [shape: f32[1,64], index: 2, kind: input, shape index: {}]
  %s3 = inlined_call_operand.vmem [shape: f32[2,8,8,64], index: 3, kind: output, shape index: {}]
  %s4 = sld [smem:[#allocation0]]
  $region53: #{sequential_nchw.10} parent=0
    _
  %s6 = ssub.s32 1, %s4
  %s7 = scalar_select 0, %s6, %s4
  loop: start=0, step=1, limit=18
  $region2: #{sequential_nchw.10} parent=0 // loop_pre_header
    _
  $region3: #{sequential_nchw.10} parent=0 // loop_header
    %s9 = sphi 0, %s13
    %p10 = scmp.ge.s32.totalorder %s9, 18
    %s16 = sphi 0, %s35
    %s17 = sphi 0, %s31
    %s18 = sphi 0, %s27
    %s19 = sphi 0, %s16
    %s20 = sphi 0, %s17
    %s21 = sphi 0, %s18
    %s22 = sphi 0, %s19
    %s23 = sphi 0, %s20
    %s24 = sphi 0, %s21
    %s42 = sphi 0, %s44
    %s45 = sphi 0, %s42
    %s46 = sphi 0, %s45
    %s62 = sphi 0, %s46
    %s68 = sphi 0, %s70
    %s71 = sphi 0, %s68
    %s72 = sphi 0, %s71
    %s88 = sphi 0, %s72
    %s92 = sphi 0, %s92
    %s94 = sphi 0, %s92
    %s95 = sphi 0, %s94
    %s109 = sphi 0, %s95
    %s117 = sphi 0, %s119
    %s120 = sphi 0, %s117
    %s121 = sphi 0, %s120
    %s137 = sphi 0, %s121
  $region4: #{sequential_nchw.10} parent=0 // loop_header_branch
    %12 = sbr.rel (%p10) target = $region8
  $region5: #{sequential_nchw.10} parent=0 // loop_body
    %s14 = ssub.s32 %s9, 1
    %s15 = ssub.s32 %s9, 2
    %s25 = sadd.s32 1, %s18
    %p26 = scmp.ge.s32.totalorder %s25, 1
    %s27 = scalar_select %p26, 0, %s25
    %s28 = sadd.s32 1, %s17
    %s29 = scalar_select %p26, %s28, %s17
    %p30 = scmp.ge.s32.totalorder %s29, 8
    %s31 = scalar_select %p30, 0, %s29
    %s32 = sadd.s32 1, %s16
    %s33 = scalar_select %p30, %s32, %s16
    %p34 = scmp.ge.s32.totalorder %s33, 2
    %s35 = scalar_select %p34, 0, %s33
    %s36 = sadd.s32 %s17, %s18
    %s37 = sadd.s32 %s31, %s27
    %s38 = ssub.s32 %s16, %s35
    %s39 = ssub.s32 %s36, %s37
    %s40 = sor.u32 %s38, %s39
    %p41 = scmp.eq.s32.totalorder %s40, 0
    %s43 = sadd.s32 %s42, 1
    %s44 = scalar_select %p41, %s42, %s43
    %p47 = pneg %p41
    %p48 = scmp.eq.s32.totalorder %s9, 15
    %p49 = por %p47, %p48
    %p50 = scmp.ne.s32.totalorder %s42, %s45
    %p51 = scmp.eq.s32.totalorder %s9, 0
    %p52 = por %p50, %p51
    %p53 = scmp.ne.s32.totalorder %s42, %s45
    %p54 = scmp.eq.s32.totalorder %s14, 15
    %p55 = por %p53, %p54
    %p56 = scmp.ne.s32.totalorder %s45, %s46
    %p57 = scmp.eq.s32.totalorder %s14, 0
    %p58 = por %p56, %p57
    %p59 = scmp.ne.s32.totalorder %s45, %s46
    %p60 = scmp.eq.s32.totalorder %s15, 15
    %p61 = por %p59, %p60
    %p63 = scmp.ne.s32.totalorder %s46, %s62
    %p64 = scmp.eq.s32.totalorder %s15, 0
    %p65 = por %p63, %p64
    %s66 = ssub.s32 %s18, %s27
    %p67 = scmp.eq.s32.totalorder %s66, 0
    %s69 = sadd.s32 %s68, 1
    %s70 = scalar_select %p67, %s68, %s69
    %p73 = pneg %p67
    %p74 = scmp.eq.s32.totalorder %s9, 15
    %p75 = por %p73, %p74
    %p76 = scmp.ne.s32.totalorder %s68, %s71
    %p77 = scmp.eq.s32.totalorder %s9, 0
    %p78 = por %p76, %p77
    %p79 = scmp.ne.s32.totalorder %s68, %s71
    %p80 = scmp.eq.s32.totalorder %s14, 15
    %p81 = por %p79, %p80
    %p82 = scmp.ne.s32.totalorder %s71, %s72
    %p83 = scmp.eq.s32.totalorder %s14, 0
    %p84 = por %p82, %p83
    %p85 = scmp.ne.s32.totalorder %s71, %s72
    %p86 = scmp.eq.s32.totalorder %s15, 15
    %p87 = por %p85, %p86
    %p89 = scmp.ne.s32.totalorder %s72, %s88
    %p90 = scmp.eq.s32.totalorder %s15, 0
    %p91 = por %p89, %p90
    %s93 = sadd.s32 %s92, 1
    %p96 = scmp.eq.s32.totalorder %s9, 15
    %p97 = scmp.ne.s32.totalorder %s92, %s94
    %p98 = scmp.eq.s32.totalorder %s9, 0
    %p99 = por %p97, %p98
    %p100 = scmp.ne.s32.totalorder %s92, %s94
    %p101 = scmp.eq.s32.totalorder %s14, 15
    %p102 = por %p100, %p101
    %p103 = scmp.ne.s32.totalorder %s94, %s95
    %p104 = scmp.eq.s32.totalorder %s14, 0
    %p105 = por %p103, %p104
    %p106 = scmp.ne.s32.totalorder %s94, %s95
    %p107 = scmp.eq.s32.totalorder %s15, 15
    %p108 = por %p106, %p107
    %p110 = scmp.ne.s32.totalorder %s95, %s109
    %p111 = scmp.eq.s32.totalorder %s15, 0
    %p112 = por %p110, %p111
    %s113 = ssub.s32 %s16, %s35
    %s114 = ssub.s32 %s17, %s31
    %s115 = sor.u32 %s113, %s114
    %p116 = scmp.eq.s32.totalorder %s115, 0
    %s118 = sadd.s32 %s117, 1
    %s119 = scalar_select %p116, %s117, %s118
    %p122 = pneg %p116
    %p123 = scmp.eq.s32.totalorder %s9, 15
    %p124 = por %p122, %p123
    %p125 = scmp.ne.s32.totalorder %s117, %s120
    %p126 = scmp.eq.s32.totalorder %s9, 0
    %p127 = por %p125, %p126
    %p128 = scmp.ne.s32.totalorder %s117, %s120
    %p129 = scmp.eq.s32.totalorder %s14, 15
    %p130 = por %p128, %p129
    %p131 = scmp.ne.s32.totalorder %s120, %s121
    %p132 = scmp.eq.s32.totalorder %s14, 0
    %p133 = por %p131, %p132
    %p134 = scmp.ne.s32.totalorder %s120, %s121
    %p135 = scmp.eq.s32.totalorder %s15, 15
    %p136 = por %p134, %p135
    %p138 = scmp.ne.s32.totalorder %s121, %s137
    %p139 = scmp.eq.s32.totalorder %s15, 0
    %p140 = por %p138, %p139
    %p141 = scmp.le.s32.totalorder 1, %s9
    %p142 = scmp.lt.s32.totalorder %s9, 17
    %p143 = pnand %p141, %p142
    %p144 = pneg %p143
    // Predicated region
    $region9: #{sequential_nchw.10} parent=5 // pred_check
      _
    $region10: #{sequential_nchw.10} parent=5 // pred_check_branch
      %146 = sbr.rel (%p143) target = $region12
    $region11: #{sequential_nchw.10} parent=5 // pred_region
      %s147 = ssub.s32 %s9, 1
      // Predicated region
      $region13: #{sequential_nchw.10} parent=11 // pred_check
        %p148 = pneg %p84
      $region14: #{sequential_nchw.10} parent=11 // pred_check_branch
        %150 = sbr.rel (%p148) target = $region16
      $region15: #{sequential_nchw.10} parent=11 // pred_region
        %p151 = scmp.lt.s32.totalorder %s21, 0
        %s152 = scalar_select %p151, %s21, 0
        %s153 = smul.addr %s152, 8
        %s154 = smul.addr %s153, 4
        %s155 = scalar_lea.vmem %s1, %s154
      $region16: #{sequential_nchw.10} parent=11 // pred_fallthru
        _
      // Predicated region
      $region17: #{sequential_nchw.10} parent=11 // pred_check
        %p156 = pneg %p105
      $region18: #{sequential_nchw.10} parent=11 // pred_check_branch
        %158 = sbr.rel (%p156) target = $region20
      $region19: #{sequential_nchw.10} parent=11 // pred_region
        _
      $region20: #{sequential_nchw.10} parent=11 // pred_fallthru
        _
    $region12: #{sequential_nchw.10} parent=5 // pred_fallthru
      _
    %p159 = scmp.lt.s32.totalorder %s9, 16
    // Predicated region
    $region21: #{sequential_nchw.10} parent=5 // pred_check
      %p160 = pneg %p159
    $region22: #{sequential_nchw.10} parent=5 // pred_check_branch
      %162 = sbr.rel (%p160) target = $region24
    $region23: #{sequential_nchw.10} parent=5 // pred_region
      // Predicated region
      $region25: #{sequential_nchw.10} parent=23 // pred_check
        %p163 = pneg %p52
      $region26: #{sequential_nchw.10} parent=23 // pred_check_branch
        %165 = sbr.rel (%p163) target = $region28
      $region27: #{sequential_nchw.10} parent=23 // pred_region
        %s166 = sadd.s32 %s17, %s18
        %p167 = scmp.lt.s32.totalorder %s16, 1
        %s168 = scalar_select %p167, %s16, 1
        %p169 = scmp.lt.s32.totalorder %s166, 7
        %s170 = scalar_select %p169, %s166, 7
        %s171 = smul.addr %s168, 8
        %s172 = sadd.s32 %s170, %s171
        %s173 = smul.addr %s172, 4
        %s174 = scalar_lea.vmem %s0, %s173
        %s175 = sadd.s32 %s17, %s18
      $region28: #{sequential_nchw.10} parent=23 // pred_fallthru
        _
    $region24: #{sequential_nchw.10} parent=5 // pred_fallthru
      _
    %p176 = scmp.le.s32.totalorder 1, %s9
    %p177 = scmp.lt.s32.totalorder %s9, 17
    %p178 = pnand %p176, %p177
    %p179 = pneg %p178
    // Predicated region
    $region29: #{sequential_nchw.10} parent=5 // pred_check
      _
    $region30: #{sequential_nchw.10} parent=5 // pred_check_branch
      %181 = sbr.rel (%p178) target = $region32
    $region31: #{sequential_nchw.10} parent=5 // pred_region
      %s182 = ssub.s32 %s9, 1
      %s183 = sadd.s32 %s20, %s21
      %p184 = scmp.lt.s32.totalorder %s19, 1
      %s185 = scalar_select %p184, %s19, 1
      %p186 = scmp.lt.s32.totalorder %s183, 7
      %s187 = scalar_select %p186, %s183, 7
      %s188 = smul.addr %s185, 8
      %s189 = sadd.s32 %s187, %s188
      %s190 = smul.addr %s189, 4
      %s191 = scalar_lea.vmem %s0, %s190
      %p192 = pneg %p58
      %p193 = pneg %p55
      %p194 = scmp.lt.s32.totalorder %s21, 0
      %s195 = scalar_select %p194, %s21, 0
      %s196 = smul.addr %s195, 8
      %s197 = smul.addr %s196, 4
      %s198 = scalar_lea.vmem %s1, %s197
      %p199 = pneg %p84
      %p200 = pneg %p81
      %p201 = pneg %p105
      %p202 = pneg %p102
      %p203 = pneg %p133
      %p204 = pneg %p130
      %p205 = scmp.lt.s32.totalorder %s19, 1
      %s206 = scalar_select %p205, %s19, 1
      %p207 = scmp.lt.s32.totalorder %s20, 7
      %s208 = scalar_select %p207, %s20, 7
      %s209 = smul.addr %s206, 8
      %s210 = sadd.s32 %s208, %s209
      %s211 = smul.addr %s210, 8
      %s212 = scalar_lea.vmem %s3, %s211
      %s213 = sadd.s32 %s20, %s21
      %p214 = scmp.lt.s32.totalorder %s19, 1
      %s215 = scalar_select %p214, %s19, 1
      %p216 = scmp.lt.s32.totalorder %s213, 7
      %s217 = scalar_select %p216, %s213, 7
      %s218 = smul.addr %s215, 8
      %s219 = sadd.s32 %s217, %s218
      %s220 = smul.addr %s219, 4
      %s221 = scalar_lea.vmem %s0, %s220
      %s222 = sadd.s32 %s20, %s21
      %p223 = scmp.lt.s32.totalorder %s21, 0
      %s224 = scalar_select %p223, %s21, 0
      %s225 = smul.addr %s224, 8
      %s226 = smul.addr %s225, 4
      %s227 = scalar_lea.vmem %s1, %s226
      %p228 = scmp.lt.s32.totalorder %s19, 1
      %s229 = scalar_select %p228, %s19, 1
      %p230 = scmp.lt.s32.totalorder %s20, 7
      %s231 = scalar_select %p230, %s20, 7
      %s232 = smul.addr %s229, 8
      %s233 = sadd.s32 %s231, %s232
      %s234 = smul.addr %s233, 8
      %s235 = scalar_lea.vmem %s3, %s234
      %p237 = scmp.eq.s32.totalorder %s21, 0
      // Predicated region
      $region33: #{sequential_nchw.10} parent=31 // pred_check
        %p238 = pneg %p237
      $region34: #{sequential_nchw.10} parent=31 // pred_check_branch
        %240 = sbr.rel (%p238) target = $region36
      $region35: #{sequential_nchw.10} parent=31 // pred_region
        %vm241 = vcmask 523264
        %242 = vst.msk [vmem:[#allocation2] sm:$0xff] %vm241, 0.0
      $region36: #{sequential_nchw.10} parent=31 // pred_fallthru
        _
      %v243 = vld [vmem:[%s221] sm:$0xf]
      %v244 = vld [vmem:[#allocation2] sm:$0xff]
      %v245 = vld [vmem:[%s227] sm:$0xf]
      %v246 = vld [vmem:[%s227 + $0x4] sm:$0xf]
      %v247 = vld [vmem:[%s227 + $0x8] sm:$0xf]
      %v248 = vld [vmem:[%s227 + $0xc] sm:$0xf]
      %v249 = vld [vmem:[%s227 + $0x10] sm:$0xf]
      %v250 = vld [vmem:[%s227 + $0x14] sm:$0xf]
      %v251 = vld [vmem:[%s227 + $0x18] sm:$0xf]
      %v252 = vld [vmem:[%s227 + $0x1c] sm:$0xf]
      %v261 = vunpack.c.l.b16 %v245
      %v262 = vunpack.c.l.b16 %v246
      %v263 = vunpack.c.l.b16 %v247
      %v264 = vunpack.c.l.b16 %v248
      %v265 = vunpack.c.l.b16 %v249
      %v266 = vunpack.c.l.b16 %v250
      %v267 = vunpack.c.l.b16 %v251
      %v268 = vunpack.c.l.b16 %v252
      %v269 = vpack.c.b16 %v262, %v261
      %v270 = vpack.c.b16 %v264, %v263
      %v271 = vpack.c.b16 %v266, %v265
      %v272 = vpack.c.b16 %v268, %v267
      %vm277 = vcmask 523264
      %v279 = vsel %vm277, %v243, 0
      %281 = vmatprep.subr.bf16.mxu0 0
      %282 = vmatpush1.bf16.msra.mxu0 %v269
      %283 = vmatprep.subr.bf16.mxu0 0
      %284 = vmatpush1.bf16.msra.mxu0 %v270
      %285 = vmatprep.subr.bf16.mxu0 0
      %286 = vmatpush1.bf16.msra.mxu0 %v271
      %287 = vmatprep.subr.bf16.mxu0 0
      %288 = vmatpush1.bf16.msra.mxu0 %v272
      %289 = vmatprep.subr.bf16.mxu0 0
      %290 = vmatpush1.bf16.msra.mxu0 0
      %291 = vmatprep.subr.bf16.mxu0 0
      %292 = vmatpush1.bf16.msra.mxu0 0
      %293 = vmatprep.subr.bf16.mxu0 0
      %294 = vmatpush1.bf16.msra.mxu0 0
      %295 = vmatprep.subr.bf16.mxu0 0
      %296 = vmatpush1.bf16.msra.mxu0 0
      %297 = vmatprep.subr.bf16.mxu0 0
      %298 = vmatpush1.bf16.msra.mxu0 0
      %299 = vmatprep.subr.bf16.mxu0 0
      %300 = vmatpush1.bf16.msra.mxu0 0
      %301 = vmatprep.subr.bf16.mxu0 0
      %302 = vmatpush1.bf16.msra.mxu0 0
      %303 = vmatprep.subr.bf16.mxu0 0
      %304 = vmatpush1.bf16.msra.mxu0 0
      %305 = vmatprep.subr.bf16.mxu0 0
      %306 = vmatpush1.bf16.msra.mxu0 0
      %307 = vmatprep.subr.bf16.mxu0 0
      %308 = vmatpush1.bf16.msra.mxu0 0
      %309 = vmatprep.subr.bf16.mxu0 0
      %310 = vmatpush1.bf16.msra.mxu0 0
      %311 = vmatprep.subr.bf16.mxu0 0
      %312 = vmatpush1.bf16.msra.mxu0 0
      %313 = vmatprep.mubr.bf16.mxu0 0
      %314 = vmatmul.mubr.bf16.gmra.mrb[0].mxu0 %v279
      %v315 = vpop.f32.mrb[0].mxu0
      %v316 = vadd.f32 0.0, %v315
      %v317 = vpop.f32.mrb[0].mxu0
      %v318 = vpop.f32.mrb[0].mxu0
      %v319 = vpop.f32.mrb[0].mxu0
      %320 = vdwg.mxu0
      %v321 = vadd.f32 %v244, %v316
      %322 = vst.msk [vmem:[#allocation2] sm:$0xff] %vm277, %v321
      // Predicated region
      $region37: #{sequential_nchw.10} parent=31 // pred_check
        %p323 = pneg %p237
      $region38: #{sequential_nchw.10} parent=31 // pred_check_branch
        %325 = sbr.rel (%p323) target = $region40
      $region39: #{sequential_nchw.10} parent=31 // pred_region
        %v326 = vld [vmem:[#allocation2] sm:$0xff]
        %v327 = vld [vmem:[%s2] sm:$0x1]
        %v329 = vlaneseq
        %v330 = vshrl.u32 %v329, 7
        %v331 = vsub.s32 0, %v330
        %v332 = vrot.slane %v327, %v331
        %v334 = vadd.f32 %v326, %v332
        %335 = vst.msk [vmem:[%s235] sm:$0xff] %vm277, %v334
      $region40: #{sequential_nchw.10} parent=31 // pred_fallthru
        _
      %p336 = scmp.lt.s32.totalorder %s19, 1
      %s337 = scalar_select %p336, %s19, 1
      %p338 = scmp.lt.s32.totalorder %s20, 7
      %s339 = scalar_select %p338, %s20, 7
      %s340 = smul.addr %s337, 8
      %s341 = sadd.s32 %s339, %s340
      %s342 = smul.addr %s341, 8
      %s343 = scalar_lea.vmem %s3, %s342
      // Predicated region
      $region41: #{sequential_nchw.10} parent=31 // pred_check
        %p344 = pneg %p130
      $region42: #{sequential_nchw.10} parent=31 // pred_check_branch
        %346 = sbr.rel (%p344) target = $region44
      $region43: #{sequential_nchw.10} parent=31 // pred_region
        _
      $region44: #{sequential_nchw.10} parent=31 // pred_fallthru
        _
    $region32: #{sequential_nchw.10} parent=5 // pred_fallthru
      _
    %p347 = scmp.le.s32.totalorder 2, %s9
    // Predicated region
    $region45: #{sequential_nchw.10} parent=5 // pred_check
      %p348 = pneg %p347
    $region46: #{sequential_nchw.10} parent=5 // pred_check_branch
      %350 = sbr.rel (%p348) target = $region48
    $region47: #{sequential_nchw.10} parent=5 // pred_region
      %s351 = ssub.s32 %s9, 2
      // Predicated region
      $region49: #{sequential_nchw.10} parent=47 // pred_check
        %p352 = pneg %p136
      $region50: #{sequential_nchw.10} parent=47 // pred_check_branch
        %354 = sbr.rel (%p352) target = $region52
      $region51: #{sequential_nchw.10} parent=47 // pred_region
        %p355 = scmp.lt.s32.totalorder %s22, 1
        %s356 = scalar_select %p355, %s22, 1
        %p357 = scmp.lt.s32.totalorder %s23, 7
        %s358 = scalar_select %p357, %s23, 7
        %s359 = smul.addr %s356, 8
        %s360 = sadd.s32 %s358, %s359
        %s361 = smul.addr %s360, 8
        %s362 = scalar_lea.vmem %s3, %s361
      $region52: #{sequential_nchw.10} parent=47 // pred_fallthru
        _
    $region48: #{sequential_nchw.10} parent=5 // pred_fallthru
      _
  $region6: #{sequential_nchw.10} parent=0 // loop_footer
    %s13 = sadd.s32 1, %s9
  $region7: #{sequential_nchw.10} parent=0 // loop_footer_branch
    %8 = sbr.rel target = $region3
  $region8: #{sequential_nchw.10} parent=0 // loop_exit
    _

// kernel: sequential_nchw.11
$region0: #{sequential_nchw.11}
  #allocation0 [shape = 'u32[]', space=smem, size = 0x4, offset = 0x4, fixed_abs, tag = 'smem constant byte address 0x4 - core index']
  #allocation1 [shape = 'u32[144,128]{1,0:T(1,128)}', space=vmem, size = 0x12000, scoped, tag = 'internal scratch']
  %s0 = inlined_call_operand.vmem [shape: f32[128,64], index: 0, kind: input, shape index: {}]
  %s1 = inlined_call_operand.vmem [shape: f32[1,64], index: 1, kind: input, shape index: {}]
  %s2 = inlined_call_operand.vmem [shape: f32[1,64], index: 2, kind: input, shape index: {}]
  %s3 = inlined_call_operand.hbm [shape: f32[128,64], index: 3, kind: output, shape index: {}]
  %s4 = sld [smem:[#allocation0]]
  $region22: #{sequential_nchw.11} parent=0
    _
  %s6 = ssub.s32 1, %s4
  %s7 = scalar_select 0, %s6, %s4
  $region1: #{sequential_nchw.11} parent=0
    #allocation2 [shape = 'u8[65536]{0}', space=vmem, size = 0x10000, scoped, tag = 'output window, operand 0, single buffered']
    #allocation3 [shape = 's32[1]{0}', space=sflag, size = 0x4, scoped, tag = 'scoped memory for sequential_nchw.11']
    %8 = vsyncpa [#allocation3], 0
    // Predicated region
    $region2: #{sequential_nchw.11} parent=1 // pred_check
      _
    $region3: #{sequential_nchw.11} parent=1 // pred_check_branch
      %10 = sbr.rel (0) target = $region5
    $region4: #{sequential_nchw.11} parent=1 // pred_region
      _
    $region5: #{sequential_nchw.11} parent=1 // pred_fallthru
      _
    // Predicated region
    $region6: #{sequential_nchw.11} parent=1 // pred_check
      _
    $region7: #{sequential_nchw.11} parent=1 // pred_check_branch
      %12 = sbr.rel (0) target = $region9
    $region8: #{sequential_nchw.11} parent=1 // pred_region
      _
    $region9: #{sequential_nchw.11} parent=1 // pred_fallthru
      _
    // Predicated region
    $region10: #{sequential_nchw.11} parent=1 // pred_check
      _
    $region11: #{sequential_nchw.11} parent=1 // pred_check_branch
      %14 = sbr.rel (0) target = $region13
    $region12: #{sequential_nchw.11} parent=1 // pred_region
      _
    $region13: #{sequential_nchw.11} parent=1 // pred_fallthru
      _
    %v15 = vld [vmem:[%s0] sm:$0xff]
    %v16 = vld [vmem:[%s0 + $0x8] sm:$0xff]
    %v17 = vld [vmem:[%s0 + $0x10] sm:$0xff]
    %v18 = vld [vmem:[%s0 + $0x18] sm:$0xff]
    %v19 = vld [vmem:[%s0 + $0x20] sm:$0xff]
    %v20 = vld [vmem:[%s0 + $0x28] sm:$0xff]
    %v21 = vld [vmem:[%s0 + $0x30] sm:$0xff]
    %v22 = vld [vmem:[%s0 + $0x38] sm:$0xff]
    %v23 = vld [vmem:[%s0 + $0x40] sm:$0xff]
    %v24 = vld [vmem:[%s0 + $0x48] sm:$0xff]
    %v25 = vld [vmem:[%s0 + $0x50] sm:$0xff]
    %v26 = vld [vmem:[%s0 + $0x58] sm:$0xff]
    %v27 = vld [vmem:[%s0 + $0x60] sm:$0xff]
    %v28 = vld [vmem:[%s0 + $0x68] sm:$0xff]
    %v29 = vld [vmem:[%s0 + $0x70] sm:$0xff]
    %v30 = vld [vmem:[%s0 + $0x78] sm:$0xff]
    %v31 = vld [vmem:[%s1] sm:$0x1]
    %v33 = vlaneseq
    %v34 = vshrl.u32 %v33, 7
    %v35 = vsub.s32 0, %v34
    %v36 = vrot.slane %v31, %v35
    %v38 = vmul.f32 %v15, %v36
    %v39 = vmul.f32 %v16, %v36
    %v40 = vmul.f32 %v17, %v36
    %v41 = vmul.f32 %v18, %v36
    %v42 = vmul.f32 %v19, %v36
    %v43 = vmul.f32 %v20, %v36
    %v44 = vmul.f32 %v21, %v36
    %v45 = vmul.f32 %v22, %v36
    %v46 = vmul.f32 %v23, %v36
    %v47 = vmul.f32 %v24, %v36
    %v48 = vmul.f32 %v25, %v36
    %v49 = vmul.f32 %v26, %v36
    %v50 = vmul.f32 %v27, %v36
    %v51 = vmul.f32 %v28, %v36
    %v52 = vmul.f32 %v29, %v36
    %v53 = vmul.f32 %v30, %v36
    %v54 = vld [vmem:[%s2] sm:$0x1]
    %v56 = vlaneseq
    %v57 = vshrl.u32 %v56, 7
    %v58 = vsub.s32 0, %v57
    %v59 = vrot.slane %v54, %v58
    %v61 = vadd.f32 %v38, %v59
    %v62 = vadd.f32 %v39, %v59
    %v63 = vadd.f32 %v40, %v59
    %v64 = vadd.f32 %v41, %v59
    %v65 = vadd.f32 %v42, %v59
    %v66 = vadd.f32 %v43, %v59
    %v67 = vadd.f32 %v44, %v59
    %v68 = vadd.f32 %v45, %v59
    %v69 = vadd.f32 %v46, %v59
    %v70 = vadd.f32 %v47, %v59
    %v71 = vadd.f32 %v48, %v59
    %v72 = vadd.f32 %v49, %v59
    %v73 = vadd.f32 %v50, %v59
    %v74 = vadd.f32 %v51, %v59
    %v75 = vadd.f32 %v52, %v59
    %v76 = vadd.f32 %v53, %v59
    %v77 = vmul.f32 %v61, 0.1
    %v78 = vmul.f32 %v62, 0.1
    %v79 = vmul.f32 %v63, 0.1
    %v80 = vmul.f32 %v64, 0.1
    %v81 = vmul.f32 %v65, 0.1
    %v82 = vmul.f32 %v66, 0.1
    %v83 = vmul.f32 %v67, 0.1
    %v84 = vmul.f32 %v68, 0.1
    %v85 = vmul.f32 %v69, 0.1
    %v86 = vmul.f32 %v70, 0.1
    %v87 = vmul.f32 %v71, 0.1
    %v88 = vmul.f32 %v72, 0.1
    %v89 = vmul.f32 %v73, 0.1
    %v90 = vmul.f32 %v74, 0.1
    %v91 = vmul.f32 %v75, 0.1
    %v92 = vmul.f32 %v76, 0.1
    %v93 = vmax.f32 %v61, %v77
    %v94 = vmax.f32 %v62, %v78
    %v95 = vmax.f32 %v63, %v79
    %v96 = vmax.f32 %v64, %v80
    %v97 = vmax.f32 %v65, %v81
    %v98 = vmax.f32 %v66, %v82
    %v99 = vmax.f32 %v67, %v83
    %v100 = vmax.f32 %v68, %v84
    %v101 = vmax.f32 %v69, %v85
    %v102 = vmax.f32 %v70, %v86
    %v103 = vmax.f32 %v71, %v87
    %v104 = vmax.f32 %v72, %v88
    %v105 = vmax.f32 %v73, %v89
    %v106 = vmax.f32 %v74, %v90
    %v107 = vmax.f32 %v75, %v91
    %v108 = vmax.f32 %v76, %v92
    %vm109 = vcmask 523264
    %110 = vst.msk [vmem:[#allocation2] sm:$0xff] %vm109, %v93
    %111 = vst.msk [vmem:[#allocation2 + $0x8] sm:$0xff] %vm109, %v94
    %112 = vst.msk [vmem:[#allocation2 + $0x10] sm:$0xff] %vm109, %v95
    %113 = vst.msk [vmem:[#allocation2 + $0x18] sm:$0xff] %vm109, %v96
    %114 = vst.msk [vmem:[#allocation2 + $0x20] sm:$0xff] %vm109, %v97
    %115 = vst.msk [vmem:[#allocation2 + $0x28] sm:$0xff] %vm109, %v98
    %116 = vst.msk [vmem:[#allocation2 + $0x30] sm:$0xff] %vm109, %v99
    %117 = vst.msk [vmem:[#allocation2 + $0x38] sm:$0xff] %vm109, %v100
    %118 = vst.msk [vmem:[#allocation2 + $0x40] sm:$0xff] %vm109, %v101
    %119 = vst.msk [vmem:[#allocation2 + $0x48] sm:$0xff] %vm109, %v102
    %120 = vst.msk [vmem:[#allocation2 + $0x50] sm:$0xff] %vm109, %v103
    %121 = vst.msk [vmem:[#allocation2 + $0x58] sm:$0xff] %vm109, %v104
    %122 = vst.msk [vmem:[#allocation2 + $0x60] sm:$0xff] %vm109, %v105
    %123 = vst.msk [vmem:[#allocation2 + $0x68] sm:$0xff] %vm109, %v106
    %124 = vst.msk [vmem:[#allocation2 + $0x70] sm:$0xff] %vm109, %v107
    %125 = vst.msk [vmem:[#allocation2 + $0x78] sm:$0xff] %vm109, %v108
    // Predicated region
    $region14: #{sequential_nchw.11} parent=1 // pred_check
      _
    $region15: #{sequential_nchw.11} parent=1 // pred_check_branch
      %127 = sbr.rel (0) target = $region17
    $region16: #{sequential_nchw.11} parent=1 // pred_region
      %s129 = ssub.s32 2048, 2048
      %130 = vsyncadd [#allocation3], %s129
      %s131 = sshll.u32 [#allocation2], 4
      %s132 = int_to_ptr.vmem [resolvable:$true] %s131
      %137 = dma.vmem_to_hbm [thread:$0]  %s132, 2048, %s3, [#allocation3], 128, 128, 8
    $region17: #{sequential_nchw.11} parent=1 // pred_fallthru
      _
    // Predicated region
    $region18: #{sequential_nchw.11} parent=1 // pred_check
      _
    $region19: #{sequential_nchw.11} parent=1 // pred_check_branch
      %139 = sbr.rel (0) target = $region21
    $region20: #{sequential_nchw.11} parent=1 // pred_region
      %140 = dma.done [#allocation3], 2048
    $region21: #{sequential_nchw.11} parent=1 // pred_fallthru
      _
    %141 = vsyncpa [#allocation3], 1

</llo_original>
